<compile_context>
chip_gen: v7x
topology: tpu7x:2x2x1
jax: 0.10.0
libtpu: 0.0.40
codegen_flags: <defaults>
</compile_context>

<pallas_src>
import functools
import math

import jax
import jax.numpy as jnp
from jax import lax
from jax.experimental import pallas as pl
from jax.experimental.pallas import tpu as pltpu

NEG_INF = -1e7  # masked_fill value used by the PyTorch module (-10000000.0)


# ----------------------------- Pallas kernel -----------------------------

def _flash_attn_kernel(q_ref, k_ref, v_ref, o_ref,
                       q_sc, m_sc, l_sc, acc_sc, *, tq, tk, sm_scale):
    """One grid step: (bh, q-tile, kv-tile) of causal flash attention.

    Block shapes: q (1, tq, dk), k (1, tk, dk), v (1, tk, dv), o (1, tq, dv).
    Scratch:      q_sc (tq, dk) bf16 pre-scaled query (per q-tile),
                  m (tq, 1), l (tq, 1), acc (tq, dv) f32 -- live across kv axis.
    """
    qi = pl.program_id(1)
    kj = pl.program_id(2)

    @pl.when(kj == 0)
    def _init():
        # Scale Q once per q-tile and cache the bf16 copy for all kv steps.
        q_sc[...] = (q_ref[0] * sm_scale).astype(jnp.bfloat16)
        m_sc[...] = jnp.full_like(m_sc, -jnp.inf)
        l_sc[...] = jnp.zeros_like(l_sc)
        acc_sc[...] = jnp.zeros_like(acc_sc)

    def _scores():
        k = k_ref[0].astype(jnp.bfloat16)                      # (tk, dk)
        return jnp.dot(q_sc[...], k.T,
                       preferred_element_type=jnp.float32)     # (tq, tk) f32

    def _update(s):
        # Online softmax update with f32 running stats, bf16 P@V on the MXU.
        v_bf = v_ref[0].astype(jnp.bfloat16)                   # (tk, dv)
        m_prev = m_sc[...]                                     # (tq, 1)
        m_new = jnp.maximum(m_prev, jnp.max(s, axis=-1, keepdims=True))
        alpha = jnp.exp(m_prev - m_new)
        p = jnp.exp(s - m_new)                                 # (tq, tk) f32
        l_sc[...] = alpha * l_sc[...] + jnp.sum(p, axis=-1, keepdims=True)
        acc_sc[...] = alpha * acc_sc[...] + jnp.dot(
            p.astype(jnp.bfloat16), v_bf, preferred_element_type=jnp.float32)
        m_sc[...] = m_new

    # Tile coordinates (scalar int32 arithmetic on program ids).
    q_row0 = qi * tq                  # first query row of this q-tile
    q_row_last = q_row0 + (tq - 1)    # last  query row of this q-tile
    k_col0 = kj * tk                  # first key column of this kv-tile
    k_col_last = k_col0 + (tk - 1)    # last  key column of this kv-tile

    # Interior tile: entirely at-or-below the diagonal -> no mask needed.
    @pl.when(k_col_last <= q_row0)
    def _interior():
        _update(_scores())

    # Diagonal tile: partially masked -> apply triu(diag=1) mask with -1e7.
    @pl.when(jnp.logical_and(k_col_last > q_row0, k_col0 <= q_row_last))
    def _diag():
        s = _scores()
        rows = q_row0 + lax.broadcasted_iota(jnp.int32, (tq, tk), 0)
        cols = k_col0 + lax.broadcasted_iota(jnp.int32, (tq, tk), 1)
        _update(jnp.where(cols > rows, NEG_INF, s))

    # Tiles fully above the diagonal (k_col0 > q_row_last) are skipped entirely.

    @pl.when(kj == pl.num_programs(2) - 1)
    def _finalize():
        inv_l = pl.reciprocal(l_sc[...], approx=True)          # EUP slot
        o_ref[0] = (acc_sc[...] * inv_l).astype(o_ref.dtype)


# ----------------------------- wrapper -----------------------------

def compute_attention(q, k, v, *, block_q=128, block_k=128):
    """Causal self-attention matching the PyTorch Compute_Attention.forward."""
    B, H, S, dk = q.shape
    dv = v.shape[-1]
    assert k.shape == (B, H, S, dk) and v.shape[:3] == (B, H, S)

    # Tile sizes: use 128 when it divides S, else fall back to the full extent
    # (a full-extent block always satisfies the (8, 128) layout rule).
    tq = block_q if S % block_q == 0 else S
    tk = block_k if S % block_k == 0 else S
    sm_scale = 1.0 / math.sqrt(dk)

    # Fold (B, H) into one grid axis: fewer, fatter grid steps.
    q3 = q.reshape(B * H, S, dk)
    k3 = k.reshape(B * H, S, dk)
    v3 = v.reshape(B * H, S, dv)

    kernel = functools.partial(_flash_attn_kernel, tq=tq, tk=tk,
                               sm_scale=sm_scale)

    out3 = pl.pallas_call(
        kernel,
        out_shape=jax.ShapeDtypeStruct((B * H, S, dv), q.dtype),
        grid_spec=pltpu.PrefetchScalarGridSpec(
            num_scalar_prefetch=0,
            grid=(B * H, S // tq, S // tk),
            in_specs=[
                pl.BlockSpec((1, tq, dk), lambda bh, qi, kj: (bh, qi, 0)),
                pl.BlockSpec((1, tk, dk), lambda bh, qi, kj: (bh, kj, 0)),
                pl.BlockSpec((1, tk, dv), lambda bh, qi, kj: (bh, kj, 0)),
            ],
            out_specs=pl.BlockSpec((1, tq, dv), lambda bh, qi, kj: (bh, qi, 0)),
            scratch_shapes=[
                pltpu.VMEM((tq, dk), jnp.bfloat16),  # pre-scaled Q (per q-tile)
                pltpu.VMEM((tq, 1), jnp.float32),    # running max
                pltpu.VMEM((tq, 1), jnp.float32),    # running sum
                pltpu.VMEM((tq, dv), jnp.float32),   # output accumulator
            ],
        ),
        compiler_params=pltpu.CompilerParams(
            dimension_semantics=("parallel", "parallel", "arbitrary"),
            vmem_limit_bytes=32 * 1024 * 1024,
        ),
    )(q3, k3, v3)
    return out3.reshape(B, H, S, dv)


# ----------------------------- pure-JAX reference -----------------------------

def compute_attention_reference(q, k, v):
    P = lax.Precision.HIGHEST
    B, H, S, dk = q.shape
    s = jnp.einsum("bhqd,bhkd->bhqk", q, k, precision=P) / math.sqrt(dk)
    mask = jnp.triu(jnp.ones((S, S), bool), k=1)
    s = jnp.where(mask, NEG_INF, s)
    p = jax.nn.softmax(s, axis=-1)
    return jnp.einsum("bhqk,bhkd->bhqd", p, v, precision=P)


# ----------------------------- main -----------------------------

if __name__ == "__main__":
    # Small but TPU-friendly shapes: lane-dense head dim (128).
    B, H, S, D = 2, 2, 256, 128

    key = jax.random.PRNGKey(0)
    kq, kk, kv = jax.random.split(key, 3)
    q = jax.random.normal(kq, (B, H, S, D), jnp.float32)
    k = jax.random.normal(kk, (B, H, S, D), jnp.float32)
    v = jax.random.normal(kv, (B, H, S, D), jnp.float32)

    out = jax.block_until_ready(compute_attention(q, k, v))
    ref = jax.block_until_ready(compute_attention_reference(q, k, v))

    assert out.shape == (B, H, S, D)
    max_err = float(jnp.max(jnp.abs(out - ref)))
    assert jnp.allclose(out, ref, atol=2e-2, rtol=2e-2), f"mismatch: {max_err}"

    print("KERNEL_OK")
</pallas_src>

<mosaic_0001>
module attributes {stable_mosaic.version = 11 : i64} {
  func.func @_flash_attn_kernel(%arg0: i32, %arg1: i32, %arg2: i32, %arg3: memref<1x128x128xf32, #tpu.memory_space<vmem>>, %arg4: memref<1x128x128xf32, #tpu.memory_space<vmem>>, %arg5: memref<1x128x128xf32, #tpu.memory_space<vmem>>, %arg6: memref<1x128x128xf32, #tpu.memory_space<vmem>>, %arg7: memref<128x128xbf16, #tpu.memory_space<vmem>>, %arg8: memref<128x1xf32, #tpu.memory_space<vmem>>, %arg9: memref<128x1xf32, #tpu.memory_space<vmem>>, %arg10: memref<128x128xf32, #tpu.memory_space<vmem>>) attributes {dimension_semantics = [#tpu.dimension_semantics<parallel>, #tpu.dimension_semantics<parallel>, #tpu.dimension_semantics<arbitrary>], iteration_bounds = array<i64: 4, 2, 2>, scalar_prefetch = 0 : i64, scratch_operands = 4 : i64, tpu.core_type = #tpu.core_type<tc>, window_params = [{transform_indices = @transform_0, window_bounds = array<i64: 1, 128, 128>}, {transform_indices = @transform_1, window_bounds = array<i64: 1, 128, 128>}, {transform_indices = @transform_2, window_bounds = array<i64: 1, 128, 128>}, {transform_indices = @transform_3, window_bounds = array<i64: 1, 128, 128>}]} {
    %c0_i32 = arith.constant 0 : i32
    %0 = arith.cmpi eq, %arg2, %c0_i32 : i32
    %1 = arith.extui %0 : i1 to i32
    %c0_i32_0 = arith.constant 0 : i32
    %2 = arith.cmpi ne, %1, %c0_i32_0 : i32
    scf.if %2 {
      %c0 = arith.constant 0 : index
      %c0_6 = arith.constant 0 : index
      %c0_7 = arith.constant 0 : index
      %18 = vector.load %arg3[%c0, %c0_6, %c0_7] : memref<1x128x128xf32, #tpu.memory_space<vmem>>, vector<1x128x128xf32>
      %19 = vector.shape_cast %18 : vector<1x128x128xf32> to vector<128x128xf32>
      %cst = arith.constant 0.0883883461 : f32
      %20 = vector.broadcast %cst : f32 to vector<128x128xf32>
      %21 = arith.mulf %19, %20 : vector<128x128xf32>
      %22 = arith.truncf %21 : vector<128x128xf32> to vector<128x128xbf16>
      %c0_8 = arith.constant 0 : index
      %c0_9 = arith.constant 0 : index
      %23 = vector.load %arg7[%c0_8, %c0_9] : memref<128x128xbf16, #tpu.memory_space<vmem>>, vector<128x128xbf16>
      tpu.vector_store %arg7[%c0_8, %c0_9], %22 {strides = array<i32>} : memref<128x128xbf16, #tpu.memory_space<vmem>>, vector<128x128xbf16>,
      %cst_10 = arith.constant 0xFF800000 : f32
      %24 = vector.broadcast %cst_10 : f32 to vector<128x1xf32>
      %c0_11 = arith.constant 0 : index
      %c0_12 = arith.constant 0 : index
      %25 = vector.load %arg8[%c0_11, %c0_12] : memref<128x1xf32, #tpu.memory_space<vmem>>, vector<128x1xf32>
      tpu.vector_store %arg8[%c0_11, %c0_12], %24 {strides = array<i32>} : memref<128x1xf32, #tpu.memory_space<vmem>>, vector<128x1xf32>,
      %cst_13 = arith.constant 0.000000e+00 : f32
      %26 = vector.broadcast %cst_13 : f32 to vector<128x1xf32>
      %c0_14 = arith.constant 0 : index
      %c0_15 = arith.constant 0 : index
      %27 = vector.load %arg9[%c0_14, %c0_15] : memref<128x1xf32, #tpu.memory_space<vmem>>, vector<128x1xf32>
      tpu.vector_store %arg9[%c0_14, %c0_15], %26 {strides = array<i32>} : memref<128x1xf32, #tpu.memory_space<vmem>>, vector<128x1xf32>,
      %cst_16 = arith.constant 0.000000e+00 : f32
      %28 = vector.broadcast %cst_16 : f32 to vector<128x128xf32>
      %c0_17 = arith.constant 0 : index
      %c0_18 = arith.constant 0 : index
      %29 = vector.load %arg10[%c0_17, %c0_18] : memref<128x128xf32, #tpu.memory_space<vmem>>, vector<128x128xf32>
      tpu.vector_store %arg10[%c0_17, %c0_18], %28 {strides = array<i32>} : memref<128x128xf32, #tpu.memory_space<vmem>>, vector<128x128xf32>,
    } else {
    }
    %c128_i32 = arith.constant 128 : i32
    %3 = arith.muli %arg1, %c128_i32 : i32
    %c127_i32 = arith.constant 127 : i32
    %4 = arith.addi %3, %c127_i32 : i32
    %c128_i32_1 = arith.constant 128 : i32
    %5 = arith.muli %arg2, %c128_i32_1 : i32
    %c127_i32_2 = arith.constant 127 : i32
    %6 = arith.addi %5, %c127_i32_2 : i32
    %7 = arith.cmpi sle, %6, %3 : i32
    %8 = arith.extui %7 : i1 to i32
    %c0_i32_3 = arith.constant 0 : i32
    %9 = arith.cmpi ne, %8, %c0_i32_3 : i32
    scf.if %9 {
      %c0 = arith.constant 0 : index
      %c0_6 = arith.constant 0 : index
      %c0_7 = arith.constant 0 : index
      %18 = vector.load %arg4[%c0, %c0_6, %c0_7] : memref<1x128x128xf32, #tpu.memory_space<vmem>>, vector<1x128x128xf32>
      %19 = vector.shape_cast %18 : vector<1x128x128xf32> to vector<128x128xf32>
      %20 = arith.truncf %19 : vector<128x128xf32> to vector<128x128xbf16>
      %c0_8 = arith.constant 0 : index
      %c0_9 = arith.constant 0 : index
      %21 = vector.load %arg7[%c0_8, %c0_9] : memref<128x128xbf16, #tpu.memory_space<vmem>>, vector<128x128xbf16>
      %22 = tpu.transpose %20, [1, 0] : vector<128x128xbf16> -> vector<128x128xbf16>
      %cst = arith.constant dense<0.000000e+00> : vector<128x128xf32>
      %23 = tpu.matmul %21, %22, %cst {dimension_numbers = #tpu.dot_dimension_numbers<[1], [0], [0], [1], [0, 0, 1, 1], [], []>} : vector<128x128xbf16>, vector<128x128xbf16>, vector<128x128xf32> -> vector<128x128xf32>
      %c0_10 = arith.constant 0 : index
      %c0_11 = arith.constant 0 : index
      %c0_12 = arith.constant 0 : index
      %24 = vector.load %arg5[%c0_10, %c0_11, %c0_12] : memref<1x128x128xf32, #tpu.memory_space<vmem>>, vector<1x128x128xf32>
      %25 = vector.shape_cast %24 : vector<1x128x128xf32> to vector<128x128xf32>
      %26 = arith.truncf %25 : vector<128x128xf32> to vector<128x128xbf16>
      %c0_13 = arith.constant 0 : index
      %c0_14 = arith.constant 0 : index
      %27 = vector.load %arg8[%c0_13, %c0_14] : memref<128x1xf32, #tpu.memory_space<vmem>>, vector<128x1xf32>
      %cst_15 = arith.constant dense<0xFF800000> : vector<128xf32>
      %28 = vector.multi_reduction <maximumf>, %23, %cst_15 [1] : vector<128x128xf32> to vector<128xf32>
      %29 = vector.shape_cast %28 : vector<128xf32> to vector<128x1xf32>
      %30 = arith.maximumf %27, %29 : vector<128x1xf32>
      %31 = arith.subf %27, %30 : vector<128x1xf32>
      %32 = math.exp %31 : vector<128x1xf32>
      %33 = vector.broadcast %30 : vector<128x1xf32> to vector<128x128xf32>
      %34 = arith.subf %23, %33 : vector<128x128xf32>
      %35 = math.exp %34 : vector<128x128xf32>
      %c0_16 = arith.constant 0 : index
      %c0_17 = arith.constant 0 : index
      %36 = vector.load %arg9[%c0_16, %c0_17] : memref<128x1xf32, #tpu.memory_space<vmem>>, vector<128x1xf32>
      %37 = arith.mulf %32, %36 : vector<128x1xf32>
      %cst_18 = arith.constant dense<0.000000e+00> : vector<128xf32>
      %38 = vector.multi_reduction <add>, %35, %cst_18 [1] : vector<128x128xf32> to vector<128xf32>
      %39 = vector.shape_cast %38 : vector<128xf32> to vector<128x1xf32>
      %40 = arith.addf %37, %39 : vector<128x1xf32>
      %c0_19 = arith.constant 0 : index
      %c0_20 = arith.constant 0 : index
      %41 = vector.load %arg9[%c0_19, %c0_20] : memref<128x1xf32, #tpu.memory_space<vmem>>, vector<128x1xf32>
      tpu.vector_store %arg9[%c0_19, %c0_20], %40 {strides = array<i32>} : memref<128x1xf32, #tpu.memory_space<vmem>>, vector<128x1xf32>,
      %c0_21 = arith.constant 0 : index
      %c0_22 = arith.constant 0 : index
      %42 = vector.load %arg10[%c0_21, %c0_22] : memref<128x128xf32, #tpu.memory_space<vmem>>, vector<128x128xf32>
      %43 = vector.broadcast %32 : vector<128x1xf32> to vector<128x128xf32>
      %44 = arith.mulf %43, %42 : vector<128x128xf32>
      %45 = arith.truncf %35 : vector<128x128xf32> to vector<128x128xbf16>
      %cst_23 = arith.constant dense<0.000000e+00> : vector<128x128xf32>
      %46 = tpu.matmul %45, %26, %cst_23 {dimension_numbers = #tpu.dot_dimension_numbers<[1], [0], [0], [1], [0, 0, 1, 1], [], []>} : vector<128x128xbf16>, vector<128x128xbf16>, vector<128x128xf32> -> vector<128x128xf32>
      %47 = arith.addf %44, %46 : vector<128x128xf32>
      %c0_24 = arith.constant 0 : index
      %c0_25 = arith.constant 0 : index
      %48 = vector.load %arg10[%c0_24, %c0_25] : memref<128x128xf32, #tpu.memory_space<vmem>>, vector<128x128xf32>
      tpu.vector_store %arg10[%c0_24, %c0_25], %47 {strides = array<i32>} : memref<128x128xf32, #tpu.memory_space<vmem>>, vector<128x128xf32>,
      %c0_26 = arith.constant 0 : index
      %c0_27 = arith.constant 0 : index
      %49 = vector.load %arg8[%c0_26, %c0_27] : memref<128x1xf32, #tpu.memory_space<vmem>>, vector<128x1xf32>
      tpu.vector_store %arg8[%c0_26, %c0_27], %30 {strides = array<i32>} : memref<128x1xf32, #tpu.memory_space<vmem>>, vector<128x1xf32>,
    } else {
    }
    %10 = arith.cmpi sgt, %6, %3 : i32
    %11 = arith.cmpi sle, %5, %4 : i32
    %12 = arith.andi %10, %11 : i1
    %13 = arith.extui %12 : i1 to i32
    %c0_i32_4 = arith.constant 0 : i32
    %14 = arith.cmpi ne, %13, %c0_i32_4 : i32
    scf.if %14 {
      %c0 = arith.constant 0 : index
      %c0_6 = arith.constant 0 : index
      %c0_7 = arith.constant 0 : index
      %18 = vector.load %arg4[%c0, %c0_6, %c0_7] : memref<1x128x128xf32, #tpu.memory_space<vmem>>, vector<1x128x128xf32>
      %19 = vector.shape_cast %18 : vector<1x128x128xf32> to vector<128x128xf32>
      %20 = arith.truncf %19 : vector<128x128xf32> to vector<128x128xbf16>
      %c0_8 = arith.constant 0 : index
      %c0_9 = arith.constant 0 : index
      %21 = vector.load %arg7[%c0_8, %c0_9] : memref<128x128xbf16, #tpu.memory_space<vmem>>, vector<128x128xbf16>
      %22 = tpu.transpose %20, [1, 0] : vector<128x128xbf16> -> vector<128x128xbf16>
      %cst = arith.constant dense<0.000000e+00> : vector<128x128xf32>
      %23 = tpu.matmul %21, %22, %cst {dimension_numbers = #tpu.dot_dimension_numbers<[1], [0], [0], [1], [0, 0, 1, 1], [], []>} : vector<128x128xbf16>, vector<128x128xbf16>, vector<128x128xf32> -> vector<128x128xf32>
      %24 = tpu.iota {dimensions = array<i32: 0>} : vector<128x128xi32>
      %25 = vector.broadcast %3 : i32 to vector<128x128xi32>
      %26 = arith.addi %25, %24 : vector<128x128xi32>
      %27 = tpu.iota {dimensions = array<i32: 1>} : vector<128x128xi32>
      %28 = vector.broadcast %5 : i32 to vector<128x128xi32>
      %29 = arith.addi %28, %27 : vector<128x128xi32>
      %30 = arith.cmpi sgt, %29, %26 : vector<128x128xi32>
      %cst_10 = arith.constant -1.000000e+07 : f32
      %31 = vector.broadcast %cst_10 : f32 to vector<128x128xf32>
      %32 = arith.select %30, %31, %23 : vector<128x128xi1>, vector<128x128xf32>
      %c0_11 = arith.constant 0 : index
      %c0_12 = arith.constant 0 : index
      %c0_13 = arith.constant 0 : index
      %33 = vector.load %arg5[%c0_11, %c0_12, %c0_13] : memref<1x128x128xf32, #tpu.memory_space<vmem>>, vector<1x128x128xf32>
      %34 = vector.shape_cast %33 : vector<1x128x128xf32> to vector<128x128xf32>
      %35 = arith.truncf %34 : vector<128x128xf32> to vector<128x128xbf16>
      %c0_14 = arith.constant 0 : index
      %c0_15 = arith.constant 0 : index
      %36 = vector.load %arg8[%c0_14, %c0_15] : memref<128x1xf32, #tpu.memory_space<vmem>>, vector<128x1xf32>
      %cst_16 = arith.constant dense<0xFF800000> : vector<128xf32>
      %37 = vector.multi_reduction <maximumf>, %32, %cst_16 [1] : vector<128x128xf32> to vector<128xf32>
      %38 = vector.shape_cast %37 : vector<128xf32> to vector<128x1xf32>
      %39 = arith.maximumf %36, %38 : vector<128x1xf32>
      %40 = arith.subf %36, %39 : vector<128x1xf32>
      %41 = math.exp %40 : vector<128x1xf32>
      %42 = vector.broadcast %39 : vector<128x1xf32> to vector<128x128xf32>
      %43 = arith.subf %32, %42 : vector<128x128xf32>
      %44 = math.exp %43 : vector<128x128xf32>
      %c0_17 = arith.constant 0 : index
      %c0_18 = arith.constant 0 : index
      %45 = vector.load %arg9[%c0_17, %c0_18] : memref<128x1xf32, #tpu.memory_space<vmem>>, vector<128x1xf32>
      %46 = arith.mulf %41, %45 : vector<128x1xf32>
      %cst_19 = arith.constant dense<0.000000e+00> : vector<128xf32>
      %47 = vector.multi_reduction <add>, %44, %cst_19 [1] : vector<128x128xf32> to vector<128xf32>
      %48 = vector.shape_cast %47 : vector<128xf32> to vector<128x1xf32>
      %49 = arith.addf %46, %48 : vector<128x1xf32>
      %c0_20 = arith.constant 0 : index
      %c0_21 = arith.constant 0 : index
      %50 = vector.load %arg9[%c0_20, %c0_21] : memref<128x1xf32, #tpu.memory_space<vmem>>, vector<128x1xf32>
      tpu.vector_store %arg9[%c0_20, %c0_21], %49 {strides = array<i32>} : memref<128x1xf32, #tpu.memory_space<vmem>>, vector<128x1xf32>,
      %c0_22 = arith.constant 0 : index
      %c0_23 = arith.constant 0 : index
      %51 = vector.load %arg10[%c0_22, %c0_23] : memref<128x128xf32, #tpu.memory_space<vmem>>, vector<128x128xf32>
      %52 = vector.broadcast %41 : vector<128x1xf32> to vector<128x128xf32>
      %53 = arith.mulf %52, %51 : vector<128x128xf32>
      %54 = arith.truncf %44 : vector<128x128xf32> to vector<128x128xbf16>
      %cst_24 = arith.constant dense<0.000000e+00> : vector<128x128xf32>
      %55 = tpu.matmul %54, %35, %cst_24 {dimension_numbers = #tpu.dot_dimension_numbers<[1], [0], [0], [1], [0, 0, 1, 1], [], []>} : vector<128x128xbf16>, vector<128x128xbf16>, vector<128x128xf32> -> vector<128x128xf32>
      %56 = arith.addf %53, %55 : vector<128x128xf32>
      %c0_25 = arith.constant 0 : index
      %c0_26 = arith.constant 0 : index
      %57 = vector.load %arg10[%c0_25, %c0_26] : memref<128x128xf32, #tpu.memory_space<vmem>>, vector<128x128xf32>
      tpu.vector_store %arg10[%c0_25, %c0_26], %56 {strides = array<i32>} : memref<128x128xf32, #tpu.memory_space<vmem>>, vector<128x128xf32>,
      %c0_27 = arith.constant 0 : index
      %c0_28 = arith.constant 0 : index
      %58 = vector.load %arg8[%c0_27, %c0_28] : memref<128x1xf32, #tpu.memory_space<vmem>>, vector<128x1xf32>
      tpu.vector_store %arg8[%c0_27, %c0_28], %39 {strides = array<i32>} : memref<128x1xf32, #tpu.memory_space<vmem>>, vector<128x1xf32>,
    } else {
    }
    %c1_i32 = arith.constant 1 : i32
    %15 = arith.cmpi eq, %arg2, %c1_i32 : i32
    %16 = arith.extui %15 : i1 to i32
    %c0_i32_5 = arith.constant 0 : i32
    %17 = arith.cmpi ne, %16, %c0_i32_5 : i32
    scf.if %17 {
      %c0 = arith.constant 0 : index
      %c0_6 = arith.constant 0 : index
      %18 = vector.load %arg9[%c0, %c0_6] : memref<128x1xf32, #tpu.memory_space<vmem>>, vector<128x1xf32>
      %19 = tpu.reciprocal %18 {approx = true} : vector<128x1xf32> -> vector<128x1xf32>
      %c0_7 = arith.constant 0 : index
      %c0_8 = arith.constant 0 : index
      %20 = vector.load %arg10[%c0_7, %c0_8] : memref<128x128xf32, #tpu.memory_space<vmem>>, vector<128x128xf32>
      %21 = vector.broadcast %19 : vector<128x1xf32> to vector<128x128xf32>
      %22 = arith.mulf %20, %21 : vector<128x128xf32>
      %c0_9 = arith.constant 0 : index
      %c0_10 = arith.constant 0 : index
      %c0_11 = arith.constant 0 : index
      %23 = vector.load %arg6[%c0_9, %c0_10, %c0_11] : memref<1x128x128xf32, #tpu.memory_space<vmem>>, vector<1x128x128xf32>
      %24 = vector.shape_cast %23 : vector<1x128x128xf32> to vector<128x128xf32>
      %25 = vector.shape_cast %22 : vector<128x128xf32> to vector<1x128x128xf32>
      tpu.vector_store %arg6[%c0_9, %c0_10, %c0_11], %25 {strides = array<i32>} : memref<1x128x128xf32, #tpu.memory_space<vmem>>, vector<1x128x128xf32>,
    } else {
    }
    return
  }
  func.func @transform_0(%arg0: i32, %arg1: i32, %arg2: i32) -> (i32, i32, i32) {
    %c0_i32 = arith.constant 0 : i32
    %c0_i32_0 = arith.constant 0 : i32
    return %arg0, %arg1, %c0_i32 : i32, i32, i32
  }
  func.func @transform_1(%arg0: i32, %arg1: i32, %arg2: i32) -> (i32, i32, i32) {
    %c0_i32 = arith.constant 0 : i32
    %c0_i32_0 = arith.constant 0 : i32
    return %arg0, %arg2, %c0_i32 : i32, i32, i32
  }
  func.func @transform_2(%arg0: i32, %arg1: i32, %arg2: i32) -> (i32, i32, i32) {
    %c0_i32 = arith.constant 0 : i32
    %c0_i32_0 = arith.constant 0 : i32
    return %arg0, %arg2, %c0_i32 : i32, i32, i32
  }
  func.func @transform_3(%arg0: i32, %arg1: i32, %arg2: i32) -> (i32, i32, i32) {
    %c0_i32 = arith.constant 0 : i32
    %c0_i32_0 = arith.constant 0 : i32
    return %arg0, %arg1, %c0_i32 : i32, i32, i32
  }
}

</mosaic_0001>

<llo_original>
// kernel: tpu_custom_call.1
$region0: #{tpu_custom_call.1}
  #allocation0 [shape = 'u32[]', space=smem, size = 0x4, offset = 0x4, fixed_abs, tag = 'smem constant byte address 0x4 - core index']
  #allocation1 [shape = 'u32[144,128]{1,0:T(1,128)}', space=vmem, size = 0x12000, scoped, tag = 'internal scratch']
  #allocation2 [shape = 'bf16[128,128]{1,0:T(16,128)(2,1)}', space=vmem, size = 0x8000, scoped, tag = 'scratch operand']
  #allocation3 [shape = 'f32[128,1]{1,0:T(8,128)}', space=vmem, size = 0x10000, scoped, tag = 'scratch operand']
  #allocation4 [shape = 'f32[128,1]{1,0:T(8,128)}', space=vmem, size = 0x10000, scoped, tag = 'scratch operand']
  #allocation5 [shape = 'f32[128,128]{1,0:T(8,128)}', space=vmem, size = 0x10000, scoped, tag = 'scratch operand']
  %s0 = inlined_call_operand.hbm [shape: f32[4,256,128], index: 0, kind: input, shape index: {}]
  %s1 = inlined_call_operand.hbm [shape: f32[4,256,128], index: 1, kind: input, shape index: {}]
  %s2 = inlined_call_operand.hbm [shape: f32[4,256,128], index: 2, kind: input, shape index: {}]
  %s3 = inlined_call_operand.hbm [shape: f32[4,256,128], index: 3, kind: output, shape index: {}]
  %s4 = sld [smem:[#allocation0]]
  $region73: #{tpu_custom_call.1} parent=0
    _
  %s6 = ssub.s32 1, %s4
  %s7 = scalar_select 0, %s6, %s4
  $region1: #{tpu_custom_call.1} parent=0
    #allocation6 [shape = 'u8[131072]{0}', space=vmem, size = 0x20000, scoped, tag = 'input window, operand 0']
    #allocation7 [shape = 's32[2]{0}', space=sflag, size = 0x8, scoped, tag = 'scoped memory for tpu_custom_call.1']
    #allocation8 [shape = 's32[2]{0}', space=sflag, size = 0x8, scoped, tag = 'scoped memory for tpu_custom_call.1']
    #allocation9 [shape = 'u8[131072]{0}', space=vmem, size = 0x20000, scoped, tag = 'input window, operand 1']
    #allocation10 [shape = 's32[2]{0}', space=sflag, size = 0x8, scoped, tag = 'scoped memory for tpu_custom_call.1']
    #allocation11 [shape = 'u8[131072]{0}', space=vmem, size = 0x20000, scoped, tag = 'input window, operand 2']
    #allocation12 [shape = 'u8[131072]{0}', space=vmem, size = 0x20000, scoped, tag = 'output window, operand 0']
    %8 = vsyncpa [#allocation7], 0
    %s9 = scalar_lea.sflag [#allocation7], 1
    %10 = vsyncpa %s9, 0
    %11 = vsyncpa [#allocation10], 0
    %s12 = scalar_lea.sflag [#allocation10], 1
    %13 = vsyncpa %s12, 0
    %14 = vsyncpa [#allocation8], 0
    %s15 = scalar_lea.sflag [#allocation8], 1
    %16 = vsyncpa %s15, 0
    loop: start=0, step=1, limit=18
    $region2: #{tpu_custom_call.1} parent=1 // loop_pre_header
      _
    $region3: #{tpu_custom_call.1} parent=1 // loop_header
      %s18 = sphi 0, %s22
      %p19 = scmp.ge.s32.totalorder %s18, 18
      %s25 = sphi 0, %s44
      %s26 = sphi 0, %s40
      %s27 = sphi 0, %s36
      %s28 = sphi 0, %s25
      %s29 = sphi 0, %s26
      %s30 = sphi 0, %s27
      %s31 = sphi 0, %s28
      %s32 = sphi 0, %s29
      %s33 = sphi 0, %s30
      %s49 = sphi 0, %s51
      %s52 = sphi 0, %s49
      %s53 = sphi 0, %s52
      %s69 = sphi 0, %s53
      %s77 = sphi 0, %s79
      %s80 = sphi 0, %s77
      %s81 = sphi 0, %s80
      %s97 = sphi 0, %s81
      %s105 = sphi 0, %s107
      %s108 = sphi 0, %s105
      %s109 = sphi 0, %s108
      %s125 = sphi 0, %s109
      %s133 = sphi 0, %s135
      %s136 = sphi 0, %s133
      %s137 = sphi 0, %s136
      %s153 = sphi 0, %s137
    $region4: #{tpu_custom_call.1} parent=1 // loop_header_branch
      %21 = sbr.rel (%p19) target = $region8
    $region5: #{tpu_custom_call.1} parent=1 // loop_body
      %s23 = ssub.s32 %s18, 1
      %s24 = ssub.s32 %s18, 2
      %s34 = sadd.s32 1, %s27
      %p35 = scmp.ge.s32.totalorder %s34, 2
      %s36 = scalar_select %p35, 0, %s34
      %s37 = sadd.s32 1, %s26
      %s38 = scalar_select %p35, %s37, %s26
      %p39 = scmp.ge.s32.totalorder %s38, 2
      %s40 = scalar_select %p39, 0, %s38
      %s41 = sadd.s32 1, %s25
      %s42 = scalar_select %p39, %s41, %s25
      %p43 = scmp.ge.s32.totalorder %s42, 4
      %s44 = scalar_select %p43, 0, %s42
      %s45 = ssub.s32 %s25, %s44
      %s46 = ssub.s32 %s26, %s40
      %s47 = sor.u32 %s45, %s46
      %p48 = scmp.eq.s32.totalorder %s47, 0
      %s50 = sadd.s32 %s49, 1
      %s51 = scalar_select %p48, %s49, %s50
      %p54 = pneg %p48
      %p55 = scmp.eq.s32.totalorder %s18, 15
      %p56 = por %p54, %p55
      %p57 = scmp.ne.s32.totalorder %s49, %s52
      %p58 = scmp.eq.s32.totalorder %s18, 0
      %p59 = por %p57, %p58
      %p60 = scmp.ne.s32.totalorder %s49, %s52
      %p61 = scmp.eq.s32.totalorder %s23, 15
      %p62 = por %p60, %p61
      %p63 = scmp.ne.s32.totalorder %s52, %s53
      %p64 = scmp.eq.s32.totalorder %s23, 0
      %p65 = por %p63, %p64
      %p66 = scmp.ne.s32.totalorder %s52, %s53
      %p67 = scmp.eq.s32.totalorder %s24, 15
      %p68 = por %p66, %p67
      %p70 = scmp.ne.s32.totalorder %s53, %s69
      %p71 = scmp.eq.s32.totalorder %s24, 0
      %p72 = por %p70, %p71
      %s73 = ssub.s32 %s25, %s44
      %s74 = ssub.s32 %s27, %s36
      %s75 = sor.u32 %s73, %s74
      %p76 = scmp.eq.s32.totalorder %s75, 0
      %s78 = sadd.s32 %s77, 1
      %s79 = scalar_select %p76, %s77, %s78
      %p82 = pneg %p76
      %p83 = scmp.eq.s32.totalorder %s18, 15
      %p84 = por %p82, %p83
      %p85 = scmp.ne.s32.totalorder %s77, %s80
      %p86 = scmp.eq.s32.totalorder %s18, 0
      %p87 = por %p85, %p86
      %p88 = scmp.ne.s32.totalorder %s77, %s80
      %p89 = scmp.eq.s32.totalorder %s23, 15
      %p90 = por %p88, %p89
      %p91 = scmp.ne.s32.totalorder %s80, %s81
      %p92 = scmp.eq.s32.totalorder %s23, 0
      %p93 = por %p91, %p92
      %p94 = scmp.ne.s32.totalorder %s80, %s81
      %p95 = scmp.eq.s32.totalorder %s24, 15
      %p96 = por %p94, %p95
      %p98 = scmp.ne.s32.totalorder %s81, %s97
      %p99 = scmp.eq.s32.totalorder %s24, 0
      %p100 = por %p98, %p99
      %s101 = ssub.s32 %s25, %s44
      %s102 = ssub.s32 %s27, %s36
      %s103 = sor.u32 %s101, %s102
      %p104 = scmp.eq.s32.totalorder %s103, 0
      %s106 = sadd.s32 %s105, 1
      %s107 = scalar_select %p104, %s105, %s106
      %p110 = pneg %p104
      %p111 = scmp.eq.s32.totalorder %s18, 15
      %p112 = por %p110, %p111
      %p113 = scmp.ne.s32.totalorder %s105, %s108
      %p114 = scmp.eq.s32.totalorder %s18, 0
      %p115 = por %p113, %p114
      %p116 = scmp.ne.s32.totalorder %s105, %s108
      %p117 = scmp.eq.s32.totalorder %s23, 15
      %p118 = por %p116, %p117
      %p119 = scmp.ne.s32.totalorder %s108, %s109
      %p120 = scmp.eq.s32.totalorder %s23, 0
      %p121 = por %p119, %p120
      %p122 = scmp.ne.s32.totalorder %s108, %s109
      %p123 = scmp.eq.s32.totalorder %s24, 15
      %p124 = por %p122, %p123
      %p126 = scmp.ne.s32.totalorder %s109, %s125
      %p127 = scmp.eq.s32.totalorder %s24, 0
      %p128 = por %p126, %p127
      %s129 = ssub.s32 %s25, %s44
      %s130 = ssub.s32 %s26, %s40
      %s131 = sor.u32 %s129, %s130
      %p132 = scmp.eq.s32.totalorder %s131, 0
      %s134 = sadd.s32 %s133, 1
      %s135 = scalar_select %p132, %s133, %s134
      %p138 = pneg %p132
      %p139 = scmp.eq.s32.totalorder %s18, 15
      %p140 = por %p138, %p139
      %p141 = scmp.ne.s32.totalorder %s133, %s136
      %p142 = scmp.eq.s32.totalorder %s18, 0
      %p143 = por %p141, %p142
      %p144 = scmp.ne.s32.totalorder %s133, %s136
      %p145 = scmp.eq.s32.totalorder %s23, 15
      %p146 = por %p144, %p145
      %p147 = scmp.ne.s32.totalorder %s136, %s137
      %p148 = scmp.eq.s32.totalorder %s23, 0
      %p149 = por %p147, %p148
      %p150 = scmp.ne.s32.totalorder %s136, %s137
      %p151 = scmp.eq.s32.totalorder %s24, 15
      %p152 = por %p150, %p151
      %p154 = scmp.ne.s32.totalorder %s137, %s153
      %p155 = scmp.eq.s32.totalorder %s24, 0
      %p156 = por %p154, %p155
      %p157 = scmp.le.s32.totalorder 1, %s18
      %p158 = scmp.lt.s32.totalorder %s18, 17
      %p159 = pnand %p157, %p158
      %p160 = pneg %p159
      // Predicated region
      $region9: #{tpu_custom_call.1} parent=5 // pred_check
        _
      $region10: #{tpu_custom_call.1} parent=5 // pred_check_branch
        %162 = sbr.rel (%p159) target = $region12
      $region11: #{tpu_custom_call.1} parent=5 // pred_region
        %s163 = ssub.s32 %s18, 1
      $region12: #{tpu_custom_call.1} parent=5 // pred_fallthru
        _
      %p164 = scmp.lt.s32.totalorder %s18, 16
      // Predicated region
      $region13: #{tpu_custom_call.1} parent=5 // pred_check
        %p165 = pneg %p164
      $region14: #{tpu_custom_call.1} parent=5 // pred_check_branch
        %167 = sbr.rel (%p165) target = $region16
      $region15: #{tpu_custom_call.1} parent=5 // pred_region
        // Predicated region
        $region17: #{tpu_custom_call.1} parent=15 // pred_check
          %p168 = pneg %p59
        $region18: #{tpu_custom_call.1} parent=15 // pred_check_branch
          %170 = sbr.rel (%p168) target = $region20
        $region19: #{tpu_custom_call.1} parent=15 // pred_region
          %s171 = sand.u32 %s49, 1
          %s172 = scalar_lea.sflag [#allocation7], %s171
          %s173 = sand.u32 %s49, 1
          %s174 = smul.addr %s173, 128
          %s175 = scalar_lea.vmem [#allocation6], %s174
          %s176 = smul.u32 16, %s26
          %s178 = ssub.s32 2048, 2048
          %179 = vsyncadd %s172, %s178
          %s180 = smul.addr %s25, 32
          %s181 = sadd.s32 %s176, %s180
          %s182 = smul.addr %s181, 128
          %s183 = scalar_lea.hbm %s0, %s182
          %s184 = sshll.u32 %s175, 4
          %s185 = int_to_ptr.vmem [resolvable:$true] %s184
          %190 = dma.hbm_to_vmem [thread:$0]  %s183, 2048, %s185, %s172, 128, 128, 8
        $region20: #{tpu_custom_call.1} parent=15 // pred_fallthru
          _
        // Predicated region
        $region21: #{tpu_custom_call.1} parent=15 // pred_check
          %p191 = pneg %p87
        $region22: #{tpu_custom_call.1} parent=15 // pred_check_branch
          %193 = sbr.rel (%p191) target = $region24
        $region23: #{tpu_custom_call.1} parent=15 // pred_region
          %s194 = sand.u32 %s18, 1
          %s195 = scalar_lea.sflag [#allocation10], %s194
          %s196 = sand.u32 %s77, 1
          %s197 = smul.addr %s196, 128
          %s198 = scalar_lea.vmem [#allocation9], %s197
          %s199 = smul.u32 16, %s27
          %s201 = ssub.s32 2048, 2048
          %202 = vsyncadd %s195, %s201
          %s203 = smul.addr %s25, 32
          %s204 = sadd.s32 %s199, %s203
          %s205 = smul.addr %s204, 128
          %s206 = scalar_lea.hbm %s1, %s205
          %s207 = sshll.u32 %s198, 4
          %s208 = int_to_ptr.vmem [resolvable:$true] %s207
          %213 = dma.hbm_to_vmem [thread:$0]  %s206, 2048, %s208, %s195, 128, 128, 8
        $region24: #{tpu_custom_call.1} parent=15 // pred_fallthru
          _
        // Predicated region
        $region25: #{tpu_custom_call.1} parent=15 // pred_check
          %p214 = pneg %p115
        $region26: #{tpu_custom_call.1} parent=15 // pred_check_branch
          %216 = sbr.rel (%p214) target = $region28
        $region27: #{tpu_custom_call.1} parent=15 // pred_region
          %s217 = sand.u32 %s18, 1
          %s218 = scalar_lea.sflag [#allocation10], %s217
          %s219 = sand.u32 %s105, 1
          %s220 = smul.addr %s219, 128
          %s221 = scalar_lea.vmem [#allocation11], %s220
          %s222 = smul.u32 16, %s27
          %s224 = ssub.s32 2048, 2048
          %225 = vsyncadd %s218, %s224
          %s226 = smul.addr %s25, 32
          %s227 = sadd.s32 %s222, %s226
          %s228 = smul.addr %s227, 128
          %s229 = scalar_lea.hbm %s2, %s228
          %s230 = sshll.u32 %s221, 4
          %s231 = int_to_ptr.vmem [resolvable:$true] %s230
          %236 = dma.hbm_to_vmem [thread:$0]  %s229, 2048, %s231, %s218, 128, 128, 8
        $region28: #{tpu_custom_call.1} parent=15 // pred_fallthru
          _
      $region16: #{tpu_custom_call.1} parent=5 // pred_fallthru
        _
      %p237 = scmp.le.s32.totalorder 1, %s18
      %p238 = scmp.lt.s32.totalorder %s18, 17
      %p239 = pnand %p237, %p238
      %p240 = pneg %p239
      // Predicated region
      $region29: #{tpu_custom_call.1} parent=5 // pred_check
        _
      $region30: #{tpu_custom_call.1} parent=5 // pred_check_branch
        %242 = sbr.rel (%p239) target = $region32
      $region31: #{tpu_custom_call.1} parent=5 // pred_region
        %s243 = ssub.s32 %s18, 1
        %s244 = sand.u32 %s52, 1
        %s245 = scalar_lea.sflag [#allocation7], %s244
        %s246 = sand.u32 %s52, 1
        %s247 = smul.addr %s246, 128
        %s248 = scalar_lea.vmem [#allocation6], %s247
        // Predicated region
        $region33: #{tpu_custom_call.1} parent=31 // pred_check
          %p249 = pneg %p65
        $region34: #{tpu_custom_call.1} parent=31 // pred_check_branch
          %251 = sbr.rel (%p249) target = $region36
        $region35: #{tpu_custom_call.1} parent=31 // pred_region
          %252 = dma.done %s245, 2048
        $region36: #{tpu_custom_call.1} parent=31 // pred_fallthru
          _
        %s253 = sand.u32 %s23, 1
        %s254 = scalar_lea.sflag [#allocation10], %s253
        %s255 = sand.u32 %s80, 1
        %s256 = smul.addr %s255, 128
        %s257 = scalar_lea.vmem [#allocation9], %s256
        // Predicated region
        $region37: #{tpu_custom_call.1} parent=31 // pred_check
          %p258 = pneg %p93
        $region38: #{tpu_custom_call.1} parent=31 // pred_check_branch
          %260 = sbr.rel (%p258) target = $region40
        $region39: #{tpu_custom_call.1} parent=31 // pred_region
          %261 = dma.done %s254, 2048
        $region40: #{tpu_custom_call.1} parent=31 // pred_fallthru
          _
        %s262 = sand.u32 %s23, 1
        %s263 = scalar_lea.sflag [#allocation10], %s262
        %s264 = sand.u32 %s108, 1
        %s265 = smul.addr %s264, 128
        %s266 = scalar_lea.vmem [#allocation11], %s265
        // Predicated region
        $region41: #{tpu_custom_call.1} parent=31 // pred_check
          %p267 = pneg %p121
        $region42: #{tpu_custom_call.1} parent=31 // pred_check_branch
          %269 = sbr.rel (%p267) target = $region44
        $region43: #{tpu_custom_call.1} parent=31 // pred_region
          %270 = dma.done %s263, 2048
        $region44: #{tpu_custom_call.1} parent=31 // pred_fallthru
          _
        %s271 = sand.u32 %s52, 1
        %s272 = scalar_lea.sflag [#allocation7], %s271
        %s273 = sand.u32 %s52, 1
        %s274 = smul.addr %s273, 128
        %s275 = scalar_lea.vmem [#allocation6], %s274
        %p276 = pneg %p65
        %p277 = pneg %p62
        %s278 = sand.u32 %s23, 1
        %s279 = scalar_lea.sflag [#allocation10], %s278
        %s280 = sand.u32 %s80, 1
        %s281 = smul.addr %s280, 128
        %s282 = scalar_lea.vmem [#allocation9], %s281
        %p283 = pneg %p93
        %p284 = pneg %p90
        %s285 = sand.u32 %s23, 1
        %s286 = scalar_lea.sflag [#allocation10], %s285
        %s287 = sand.u32 %s108, 1
        %s288 = smul.addr %s287, 128
        %s289 = scalar_lea.vmem [#allocation11], %s288
        %p290 = pneg %p121
        %p291 = pneg %p118
        %p292 = pneg %p149
        %p293 = pneg %p146
        %s294 = sand.u32 %s136, 1
        %s295 = scalar_lea.sflag [#allocation8], %s294
        %s296 = sand.u32 %s136, 1
        %s297 = smul.addr %s296, 128
        %s298 = scalar_lea.vmem [#allocation12], %s297
        %s299 = smul.u32 16, %s29
        %s300 = smul.u32 16, %s30
        %s301 = smul.u32 16, %s30
        %s302 = smul.u32 16, %s29
        %p304 = scmp.eq.s32.totalorder %s30, 0
        // Predicated region
        $region45: #{tpu_custom_call.1} parent=31 // pred_check
          %p305 = pneg %p304
        $region46: #{tpu_custom_call.1} parent=31 // pred_check_branch
          %307 = sbr.rel (%p305) target = $region48
        $region47: #{tpu_custom_call.1} parent=31 // pred_region
          %v308 = vld [vmem:[%s248] sm:$0xff]
          %v309 = vld [vmem:[%s248 + $0x8] sm:$0xff]
          %v310 = vld [vmem:[%s248 + $0x10] sm:$0xff]
          %v311 = vld [vmem:[%s248 + $0x18] sm:$0xff]
          %v312 = vld [vmem:[%s248 + $0x20] sm:$0xff]
          %v313 = vld [vmem:[%s248 + $0x28] sm:$0xff]
          %v314 = vld [vmem:[%s248 + $0x30] sm:$0xff]
          %v315 = vld [vmem:[%s248 + $0x38] sm:$0xff]
          %v316 = vld [vmem:[%s248 + $0x40] sm:$0xff]
          %v317 = vld [vmem:[%s248 + $0x48] sm:$0xff]
          %v318 = vld [vmem:[%s248 + $0x50] sm:$0xff]
          %v319 = vld [vmem:[%s248 + $0x58] sm:$0xff]
          %v320 = vld [vmem:[%s248 + $0x60] sm:$0xff]
          %v321 = vld [vmem:[%s248 + $0x68] sm:$0xff]
          %v322 = vld [vmem:[%s248 + $0x70] sm:$0xff]
          %v323 = vld [vmem:[%s248 + $0x78] sm:$0xff]
          %v324 = vmul.f32 %v308, 0.088388346
          %v325 = vmul.f32 %v309, 0.088388346
          %v326 = vmul.f32 %v310, 0.088388346
          %v327 = vmul.f32 %v311, 0.088388346
          %v328 = vmul.f32 %v312, 0.088388346
          %v329 = vmul.f32 %v313, 0.088388346
          %v330 = vmul.f32 %v314, 0.088388346
          %v331 = vmul.f32 %v315, 0.088388346
          %v332 = vmul.f32 %v316, 0.088388346
          %v333 = vmul.f32 %v317, 0.088388346
          %v334 = vmul.f32 %v318, 0.088388346
          %v335 = vmul.f32 %v319, 0.088388346
          %v336 = vmul.f32 %v320, 0.088388346
          %v337 = vmul.f32 %v321, 0.088388346
          %v338 = vmul.f32 %v322, 0.088388346
          %v339 = vmul.f32 %v323, 0.088388346
          %v340 = vpack.c.bf16 %v325, %v324
          %v341 = vpack.c.bf16 %v327, %v326
          %v342 = vpack.c.bf16 %v329, %v328
          %v343 = vpack.c.bf16 %v331, %v330
          %v344 = vpack.c.bf16 %v333, %v332
          %v345 = vpack.c.bf16 %v335, %v334
          %v346 = vpack.c.bf16 %v337, %v336
          %v347 = vpack.c.bf16 %v339, %v338
          %348 = vst [vmem:[#allocation2] sm:$0xff] %v340
          %349 = vst [vmem:[#allocation2 + $0x8] sm:$0xff] %v341
          %350 = vst [vmem:[#allocation2 + $0x10] sm:$0xff] %v342
          %351 = vst [vmem:[#allocation2 + $0x18] sm:$0xff] %v343
          %352 = vst [vmem:[#allocation2 + $0x20] sm:$0xff] %v344
          %353 = vst [vmem:[#allocation2 + $0x28] sm:$0xff] %v345
          %354 = vst [vmem:[#allocation2 + $0x30] sm:$0xff] %v346
          %355 = vst [vmem:[#allocation2 + $0x38] sm:$0xff] %v347
          %vm356 = vcmask 7168
          %357 = vst.msk [vmem:[#allocation3] sm:$0xff] %vm356, -inf
          %358 = vst.msk [vmem:[#allocation3 + $0x8] sm:$0xff] %vm356, -inf
          %359 = vst.msk [vmem:[#allocation3 + $0x10] sm:$0xff] %vm356, -inf
          %360 = vst.msk [vmem:[#allocation3 + $0x18] sm:$0xff] %vm356, -inf
          %361 = vst.msk [vmem:[#allocation3 + $0x20] sm:$0xff] %vm356, -inf
          %362 = vst.msk [vmem:[#allocation3 + $0x28] sm:$0xff] %vm356, -inf
          %363 = vst.msk [vmem:[#allocation3 + $0x30] sm:$0xff] %vm356, -inf
          %364 = vst.msk [vmem:[#allocation3 + $0x38] sm:$0xff] %vm356, -inf
          %365 = vst.msk [vmem:[#allocation3 + $0x40] sm:$0xff] %vm356, -inf
          %366 = vst.msk [vmem:[#allocation3 + $0x48] sm:$0xff] %vm356, -inf
          %367 = vst.msk [vmem:[#allocation3 + $0x50] sm:$0xff] %vm356, -inf
          %368 = vst.msk [vmem:[#allocation3 + $0x58] sm:$0xff] %vm356, -inf
          %369 = vst.msk [vmem:[#allocation3 + $0x60] sm:$0xff] %vm356, -inf
          %370 = vst.msk [vmem:[#allocation3 + $0x68] sm:$0xff] %vm356, -inf
          %371 = vst.msk [vmem:[#allocation3 + $0x70] sm:$0xff] %vm356, -inf
          %372 = vst.msk [vmem:[#allocation3 + $0x78] sm:$0xff] %vm356, -inf
          %373 = vst.msk [vmem:[#allocation4] sm:$0xff] %vm356, 0.0
          %374 = vst.msk [vmem:[#allocation4 + $0x8] sm:$0xff] %vm356, 0.0
          %375 = vst.msk [vmem:[#allocation4 + $0x10] sm:$0xff] %vm356, 0.0
          %376 = vst.msk [vmem:[#allocation4 + $0x18] sm:$0xff] %vm356, 0.0
          %377 = vst.msk [vmem:[#allocation4 + $0x20] sm:$0xff] %vm356, 0.0
          %378 = vst.msk [vmem:[#allocation4 + $0x28] sm:$0xff] %vm356, 0.0
          %379 = vst.msk [vmem:[#allocation4 + $0x30] sm:$0xff] %vm356, 0.0
          %380 = vst.msk [vmem:[#allocation4 + $0x38] sm:$0xff] %vm356, 0.0
          %381 = vst.msk [vmem:[#allocation4 + $0x40] sm:$0xff] %vm356, 0.0
          %382 = vst.msk [vmem:[#allocation4 + $0x48] sm:$0xff] %vm356, 0.0
          %383 = vst.msk [vmem:[#allocation4 + $0x50] sm:$0xff] %vm356, 0.0
          %384 = vst.msk [vmem:[#allocation4 + $0x58] sm:$0xff] %vm356, 0.0
          %385 = vst.msk [vmem:[#allocation4 + $0x60] sm:$0xff] %vm356, 0.0
          %386 = vst.msk [vmem:[#allocation4 + $0x68] sm:$0xff] %vm356, 0.0
          %387 = vst.msk [vmem:[#allocation4 + $0x70] sm:$0xff] %vm356, 0.0
          %388 = vst.msk [vmem:[#allocation4 + $0x78] sm:$0xff] %vm356, 0.0
          %389 = vst [vmem:[#allocation5] sm:$0xff] 0.0
          %390 = vst [vmem:[#allocation5 + $0x8] sm:$0xff] 0.0
          %391 = vst [vmem:[#allocation5 + $0x10] sm:$0xff] 0.0
          %392 = vst [vmem:[#allocation5 + $0x18] sm:$0xff] 0.0
          %393 = vst [vmem:[#allocation5 + $0x20] sm:$0xff] 0.0
          %394 = vst [vmem:[#allocation5 + $0x28] sm:$0xff] 0.0
          %395 = vst [vmem:[#allocation5 + $0x30] sm:$0xff] 0.0
          %396 = vst [vmem:[#allocation5 + $0x38] sm:$0xff] 0.0
          %397 = vst [vmem:[#allocation5 + $0x40] sm:$0xff] 0.0
          %398 = vst [vmem:[#allocation5 + $0x48] sm:$0xff] 0.0
          %399 = vst [vmem:[#allocation5 + $0x50] sm:$0xff] 0.0
          %400 = vst [vmem:[#allocation5 + $0x58] sm:$0xff] 0.0
          %401 = vst [vmem:[#allocation5 + $0x60] sm:$0xff] 0.0
          %402 = vst [vmem:[#allocation5 + $0x68] sm:$0xff] 0.0
          %403 = vst [vmem:[#allocation5 + $0x70] sm:$0xff] 0.0
          %404 = vst [vmem:[#allocation5 + $0x78] sm:$0xff] 0.0
        $region48: #{tpu_custom_call.1} parent=31 // pred_fallthru
          _
        %s405 = smul.u32 %s29, 128
        %s406 = sadd.s32 %s405, 127
        %s407 = smul.u32 %s30, 128
        %s408 = sadd.s32 %s407, 127
        %p409 = scmp.le.s32.totalorder %s408, %s405
        // Predicated region
        $region49: #{tpu_custom_call.1} parent=31 // pred_check
          %p410 = pneg %p409
        $region50: #{tpu_custom_call.1} parent=31 // pred_check_branch
          %412 = sbr.rel (%p410) target = $region52
        $region51: #{tpu_custom_call.1} parent=31 // pred_region
          %v413 = vld [vmem:[%s257] sm:$0xff]
          %v414 = vld [vmem:[%s257 + $0x8] sm:$0xff]
          %v415 = vld [vmem:[%s257 + $0x10] sm:$0xff]
          %v416 = vld [vmem:[%s257 + $0x18] sm:$0xff]
          %v417 = vld [vmem:[%s257 + $0x20] sm:$0xff]
          %v418 = vld [vmem:[%s257 + $0x28] sm:$0xff]
          %v419 = vld [vmem:[%s257 + $0x30] sm:$0xff]
          %v420 = vld [vmem:[%s257 + $0x38] sm:$0xff]
          %v421 = vld [vmem:[%s257 + $0x40] sm:$0xff]
          %v422 = vld [vmem:[%s257 + $0x48] sm:$0xff]
          %v423 = vld [vmem:[%s257 + $0x50] sm:$0xff]
          %v424 = vld [vmem:[%s257 + $0x58] sm:$0xff]
          %v425 = vld [vmem:[%s257 + $0x60] sm:$0xff]
          %v426 = vld [vmem:[%s257 + $0x68] sm:$0xff]
          %v427 = vld [vmem:[%s257 + $0x70] sm:$0xff]
          %v428 = vld [vmem:[%s257 + $0x78] sm:$0xff]
          %v429 = vpack.c.bf16 %v414, %v413
          %v430 = vpack.c.bf16 %v416, %v415
          %v431 = vpack.c.bf16 %v418, %v417
          %v432 = vpack.c.bf16 %v420, %v419
          %v433 = vpack.c.bf16 %v422, %v421
          %v434 = vpack.c.bf16 %v424, %v423
          %v435 = vpack.c.bf16 %v426, %v425
          %v436 = vpack.c.bf16 %v428, %v427
          %v437 = vld [vmem:[#allocation2] sm:$0xff]
          %v438 = vld [vmem:[#allocation2 + $0x8] sm:$0xff]
          %v439 = vld [vmem:[#allocation2 + $0x10] sm:$0xff]
          %v440 = vld [vmem:[#allocation2 + $0x18] sm:$0xff]
          %v441 = vld [vmem:[#allocation2 + $0x20] sm:$0xff]
          %v442 = vld [vmem:[#allocation2 + $0x28] sm:$0xff]
          %v443 = vld [vmem:[#allocation2 + $0x30] sm:$0xff]
          %v444 = vld [vmem:[#allocation2 + $0x38] sm:$0xff]
          %445 = vmatprep.subr.bf16.mxu0 0
          %446 = vmatpush1.bf16.xpose.msra.mxu0 %v429
          %447 = vmatprep.subr.bf16.mxu0 0
          %448 = vmatpush1.bf16.xpose.msra.mxu0 %v430
          %449 = vmatprep.subr.bf16.mxu0 0
          %450 = vmatpush1.bf16.xpose.msra.mxu0 %v431
          %451 = vmatprep.subr.bf16.mxu0 0
          %452 = vmatpush1.bf16.xpose.msra.mxu0 %v432
          %453 = vmatprep.subr.bf16.mxu0 0
          %454 = vmatpush1.bf16.xpose.msra.mxu0 %v433
          %455 = vmatprep.subr.bf16.mxu0 0
          %456 = vmatpush1.bf16.xpose.msra.mxu0 %v434
          %457 = vmatprep.subr.bf16.mxu0 0
          %458 = vmatpush1.bf16.xpose.msra.mxu0 %v435
          %459 = vmatprep.subr.bf16.mxu0 0
          %460 = vmatpush1.bf16.xpose.msra.mxu0 %v436
          %461 = vmatprep.subr.bf16.mxu0 0
          %462 = vmatpush1.bf16.xpose.msra.mxu0 0
          %463 = vmatprep.subr.bf16.mxu0 0
          %464 = vmatpush1.bf16.xpose.msra.mxu0 0
          %465 = vmatprep.subr.bf16.mxu0 0
          %466 = vmatpush1.bf16.xpose.msra.mxu0 0
          %467 = vmatprep.subr.bf16.mxu0 0
          %468 = vmatpush1.bf16.xpose.msra.mxu0 0
          %469 = vmatprep.subr.bf16.mxu0 0
          %470 = vmatpush1.bf16.xpose.msra.mxu0 0
          %471 = vmatprep.subr.bf16.mxu0 0
          %472 = vmatpush1.bf16.xpose.msra.mxu0 0
          %473 = vmatprep.subr.bf16.mxu0 0
          %474 = vmatpush1.bf16.xpose.msra.mxu0 0
          %475 = vmatprep.subr.bf16.mxu0 0
          %476 = vmatpush1.bf16.xpose.msra.mxu0 0
          %477 = vmatprep.mubr.bf16.mxu0 0
          %478 = vmatmul.mubr.bf16.gmra.mrb[0].mxu0 %v437
          %v479 = vpop.f32.mrb[0].mxu0
          %v480 = vadd.f32 0.0, %v479
          %v481 = vpop.f32.mrb[0].mxu0
          %v482 = vpop.f32.mrb[0].mxu0
          %v483 = vadd.f32 0.0, %v482
          %v484 = vpop.f32.mrb[0].mxu0
          %485 = vmatprep.mubr.bf16.mxu0 0
          %486 = vmatmul.mubr.bf16.gmra.mrb[0].mxu0 %v438
          %v487 = vpop.f32.mrb[0].mxu0
          %v488 = vadd.f32 0.0, %v487
          %v489 = vpop.f32.mrb[0].mxu0
          %v490 = vpop.f32.mrb[0].mxu0
          %v491 = vadd.f32 0.0, %v490
          %v492 = vpop.f32.mrb[0].mxu0
          %493 = vmatprep.mubr.bf16.mxu0 0
          %494 = vmatmul.mubr.bf16.gmra.mrb[0].mxu0 %v439
          %v495 = vpop.f32.mrb[0].mxu0
          %v496 = vadd.f32 0.0, %v495
          %v497 = vpop.f32.mrb[0].mxu0
          %v498 = vpop.f32.mrb[0].mxu0
          %v499 = vadd.f32 0.0, %v498
          %v500 = vpop.f32.mrb[0].mxu0
          %501 = vmatprep.mubr.bf16.mxu0 0
          %502 = vmatmul.mubr.bf16.gmra.mrb[0].mxu0 %v440
          %v503 = vpop.f32.mrb[0].mxu0
          %v504 = vadd.f32 0.0, %v503
          %v505 = vpop.f32.mrb[0].mxu0
          %v506 = vpop.f32.mrb[0].mxu0
          %v507 = vadd.f32 0.0, %v506
          %v508 = vpop.f32.mrb[0].mxu0
          %509 = vmatprep.mubr.bf16.mxu0 0
          %510 = vmatmul.mubr.bf16.gmra.mrb[0].mxu0 %v441
          %v511 = vpop.f32.mrb[0].mxu0
          %v512 = vadd.f32 0.0, %v511
          %v513 = vpop.f32.mrb[0].mxu0
          %v514 = vpop.f32.mrb[0].mxu0
          %v515 = vadd.f32 0.0, %v514
          %v516 = vpop.f32.mrb[0].mxu0
          %517 = vmatprep.mubr.bf16.mxu0 0
          %518 = vmatmul.mubr.bf16.gmra.mrb[0].mxu0 %v442
          %v519 = vpop.f32.mrb[0].mxu0
          %v520 = vadd.f32 0.0, %v519
          %v521 = vpop.f32.mrb[0].mxu0
          %v522 = vpop.f32.mrb[0].mxu0
          %v523 = vadd.f32 0.0, %v522
          %v524 = vpop.f32.mrb[0].mxu0
          %525 = vmatprep.mubr.bf16.mxu0 0
          %526 = vmatmul.mubr.bf16.gmra.mrb[0].mxu0 %v443
          %v527 = vpop.f32.mrb[0].mxu0
          %v528 = vadd.f32 0.0, %v527
          %v529 = vpop.f32.mrb[0].mxu0
          %v530 = vpop.f32.mrb[0].mxu0
          %v531 = vadd.f32 0.0, %v530
          %v532 = vpop.f32.mrb[0].mxu0
          %533 = vmatprep.mubr.bf16.mxu0 0
          %534 = vmatmul.mubr.bf16.gmra.mrb[0].mxu0 %v444
          %v535 = vpop.f32.mrb[0].mxu0
          %v536 = vadd.f32 0.0, %v535
          %v537 = vpop.f32.mrb[0].mxu0
          %v538 = vpop.f32.mrb[0].mxu0
          %v539 = vadd.f32 0.0, %v538
          %v540 = vpop.f32.mrb[0].mxu0
          %541 = vdwg.mxu0
          %v542 = vld [vmem:[%s266] sm:$0xff]
          %v543 = vld [vmem:[%s266 + $0x8] sm:$0xff]
          %v544 = vld [vmem:[%s266 + $0x10] sm:$0xff]
          %v545 = vld [vmem:[%s266 + $0x18] sm:$0xff]
          %v546 = vld [vmem:[%s266 + $0x20] sm:$0xff]
          %v547 = vld [vmem:[%s266 + $0x28] sm:$0xff]
          %v548 = vld [vmem:[%s266 + $0x30] sm:$0xff]
          %v549 = vld [vmem:[%s266 + $0x38] sm:$0xff]
          %v550 = vld [vmem:[%s266 + $0x40] sm:$0xff]
          %v551 = vld [vmem:[%s266 + $0x48] sm:$0xff]
          %v552 = vld [vmem:[%s266 + $0x50] sm:$0xff]
          %v553 = vld [vmem:[%s266 + $0x58] sm:$0xff]
          %v554 = vld [vmem:[%s266 + $0x60] sm:$0xff]
          %v555 = vld [vmem:[%s266 + $0x68] sm:$0xff]
          %v556 = vld [vmem:[%s266 + $0x70] sm:$0xff]
          %v557 = vld [vmem:[%s266 + $0x78] sm:$0xff]
          %v558 = vpack.c.bf16 %v543, %v542
          %v559 = vpack.c.bf16 %v545, %v544
          %v560 = vpack.c.bf16 %v547, %v546
          %v561 = vpack.c.bf16 %v549, %v548
          %v562 = vpack.c.bf16 %v551, %v550
          %v563 = vpack.c.bf16 %v553, %v552
          %v564 = vpack.c.bf16 %v555, %v554
          %v565 = vpack.c.bf16 %v557, %v556
          %v566 = vld [vmem:[#allocation3] sm:$0xff]
          %v567 = vld [vmem:[#allocation3 + $0x8] sm:$0xff]
          %v568 = vld [vmem:[#allocation3 + $0x10] sm:$0xff]
          %v569 = vld [vmem:[#allocation3 + $0x18] sm:$0xff]
          %v570 = vld [vmem:[#allocation3 + $0x20] sm:$0xff]
          %v571 = vld [vmem:[#allocation3 + $0x28] sm:$0xff]
          %v572 = vld [vmem:[#allocation3 + $0x30] sm:$0xff]
          %v573 = vld [vmem:[#allocation3 + $0x38] sm:$0xff]
          %v574 = vld [vmem:[#allocation3 + $0x40] sm:$0xff]
          %v575 = vld [vmem:[#allocation3 + $0x48] sm:$0xff]
          %v576 = vld [vmem:[#allocation3 + $0x50] sm:$0xff]
          %v577 = vld [vmem:[#allocation3 + $0x58] sm:$0xff]
          %v578 = vld [vmem:[#allocation3 + $0x60] sm:$0xff]
          %v579 = vld [vmem:[#allocation3 + $0x68] sm:$0xff]
          %v580 = vld [vmem:[#allocation3 + $0x70] sm:$0xff]
          %v581 = vld [vmem:[#allocation3 + $0x78] sm:$0xff]
          %582 = vmax.xlane.f32.xlu0 %v480
          %v583 = vpop.xlane.xlu0 %582
          %584 = vmax.xlane.f32.xlu0 %v483
          %v585 = vpop.xlane.xlu0 %584
          %586 = vmax.xlane.f32.xlu0 %v488
          %v587 = vpop.xlane.xlu0 %586
          %588 = vmax.xlane.f32.xlu0 %v491
          %v589 = vpop.xlane.xlu0 %588
          %590 = vmax.xlane.f32.xlu0 %v496
          %v591 = vpop.xlane.xlu0 %590
          %592 = vmax.xlane.f32.xlu0 %v499
          %v593 = vpop.xlane.xlu0 %592
          %594 = vmax.xlane.f32.xlu0 %v504
          %v595 = vpop.xlane.xlu0 %594
          %596 = vmax.xlane.f32.xlu0 %v507
          %v597 = vpop.xlane.xlu0 %596
          %598 = vmax.xlane.f32.xlu0 %v512
          %v599 = vpop.xlane.xlu0 %598
          %600 = vmax.xlane.f32.xlu0 %v515
          %v601 = vpop.xlane.xlu0 %600
          %602 = vmax.xlane.f32.xlu0 %v520
          %v603 = vpop.xlane.xlu0 %602
          %604 = vmax.xlane.f32.xlu0 %v523
          %v605 = vpop.xlane.xlu0 %604
          %606 = vmax.xlane.f32.xlu0 %v528
          %v607 = vpop.xlane.xlu0 %606
          %608 = vmax.xlane.f32.xlu0 %v531
          %v609 = vpop.xlane.xlu0 %608
          %610 = vmax.xlane.f32.xlu0 %v536
          %v611 = vpop.xlane.xlu0 %610
          %612 = vmax.xlane.f32.xlu0 %v539
          %v613 = vpop.xlane.xlu0 %612
          %v614 = vmax.f32 %v566, %v583
          %v615 = vmax.f32 %v567, %v585
          %v616 = vmax.f32 %v568, %v587
          %v617 = vmax.f32 %v569, %v589
          %v618 = vmax.f32 %v570, %v591
          %v619 = vmax.f32 %v571, %v593
          %v620 = vmax.f32 %v572, %v595
          %v621 = vmax.f32 %v573, %v597
          %v622 = vmax.f32 %v574, %v599
          %v623 = vmax.f32 %v575, %v601
          %v624 = vmax.f32 %v576, %v603
          %v625 = vmax.f32 %v577, %v605
          %v626 = vmax.f32 %v578, %v607
          %v627 = vmax.f32 %v579, %v609
          %v628 = vmax.f32 %v580, %v611
          %v629 = vmax.f32 %v581, %v613
          %v630 = vsub.f32 %v566, %v614
          %v631 = vsub.f32 %v567, %v615
          %v632 = vsub.f32 %v568, %v616
          %v633 = vsub.f32 %v569, %v617
          %v634 = vsub.f32 %v570, %v618
          %v635 = vsub.f32 %v571, %v619
          %v636 = vsub.f32 %v572, %v620
          %v637 = vsub.f32 %v573, %v621
          %v638 = vsub.f32 %v574, %v622
          %v639 = vsub.f32 %v575, %v623
          %v640 = vsub.f32 %v576, %v624
          %v641 = vsub.f32 %v577, %v625
          %v642 = vsub.f32 %v578, %v626
          %v643 = vsub.f32 %v579, %v627
          %v644 = vsub.f32 %v580, %v628
          %v645 = vsub.f32 %v581, %v629
          %v646 = vmul.f32 %v630, 1.442695
          %v647 = vpow.pop %v646
          %v648 = vmul.f32 %v631, 1.442695
          %v649 = vpow.pop %v648
          %v650 = vmul.f32 %v632, 1.442695
          %v651 = vpow.pop %v650
          %v652 = vmul.f32 %v633, 1.442695
          %v653 = vpow.pop %v652
          %v654 = vmul.f32 %v634, 1.442695
          %v655 = vpow.pop %v654
          %v656 = vmul.f32 %v635, 1.442695
          %v657 = vpow.pop %v656
          %v658 = vmul.f32 %v636, 1.442695
          %v659 = vpow.pop %v658
          %v660 = vmul.f32 %v637, 1.442695
          %v661 = vpow.pop %v660
          %v662 = vmul.f32 %v638, 1.442695
          %v663 = vpow.pop %v662
          %v664 = vmul.f32 %v639, 1.442695
          %v665 = vpow.pop %v664
          %v666 = vmul.f32 %v640, 1.442695
          %v667 = vpow.pop %v666
          %v668 = vmul.f32 %v641, 1.442695
          %v669 = vpow.pop %v668
          %v670 = vmul.f32 %v642, 1.442695
          %v671 = vpow.pop %v670
          %v672 = vmul.f32 %v643, 1.442695
          %v673 = vpow.pop %v672
          %v674 = vmul.f32 %v644, 1.442695
          %v675 = vpow.pop %v674
          %v676 = vmul.f32 %v645, 1.442695
          %v677 = vpow.pop %v676
          %679 = vset.pattern.permute.xlu0 0
          %680 = vperm.xlu0 %679, %v614
          %v681 = vpop.permute.xlu0 %680
          %684 = vset.pattern.permute.xlu0 0
          %685 = vperm.xlu0 %684, %v615
          %v686 = vpop.permute.xlu0 %685
          %689 = vset.pattern.permute.xlu0 0
          %690 = vperm.xlu0 %689, %v616
          %v691 = vpop.permute.xlu0 %690
          %694 = vset.pattern.permute.xlu0 0
          %695 = vperm.xlu0 %694, %v617
          %v696 = vpop.permute.xlu0 %695
          %699 = vset.pattern.permute.xlu0 0
          %700 = vperm.xlu0 %699, %v618
          %v701 = vpop.permute.xlu0 %700
          %704 = vset.pattern.permute.xlu0 0
          %705 = vperm.xlu0 %704, %v619
          %v706 = vpop.permute.xlu0 %705
          %709 = vset.pattern.permute.xlu0 0
          %710 = vperm.xlu0 %709, %v620
          %v711 = vpop.permute.xlu0 %710
          %714 = vset.pattern.permute.xlu0 0
          %715 = vperm.xlu0 %714, %v621
          %v716 = vpop.permute.xlu0 %715
          %719 = vset.pattern.permute.xlu0 0
          %720 = vperm.xlu0 %719, %v622
          %v721 = vpop.permute.xlu0 %720
          %724 = vset.pattern.permute.xlu0 0
          %725 = vperm.xlu0 %724, %v623
          %v726 = vpop.permute.xlu0 %725
          %729 = vset.pattern.permute.xlu0 0
          %730 = vperm.xlu0 %729, %v624
          %v731 = vpop.permute.xlu0 %730
          %734 = vset.pattern.permute.xlu0 0
          %735 = vperm.xlu0 %734, %v625
          %v736 = vpop.permute.xlu0 %735
          %739 = vset.pattern.permute.xlu0 0
          %740 = vperm.xlu0 %739, %v626
          %v741 = vpop.permute.xlu0 %740
          %744 = vset.pattern.permute.xlu0 0
          %745 = vperm.xlu0 %744, %v627
          %v746 = vpop.permute.xlu0 %745
          %749 = vset.pattern.permute.xlu0 0
          %750 = vperm.xlu0 %749, %v628
          %v751 = vpop.permute.xlu0 %750
          %754 = vset.pattern.permute.xlu0 0
          %755 = vperm.xlu0 %754, %v629
          %v756 = vpop.permute.xlu0 %755
          %v758 = vsub.f32 %v480, %v681
          %v759 = vsub.f32 %v483, %v686
          %v760 = vsub.f32 %v488, %v691
          %v761 = vsub.f32 %v491, %v696
          %v762 = vsub.f32 %v496, %v701
          %v763 = vsub.f32 %v499, %v706
          %v764 = vsub.f32 %v504, %v711
          %v765 = vsub.f32 %v507, %v716
          %v766 = vsub.f32 %v512, %v721
          %v767 = vsub.f32 %v515, %v726
          %v768 = vsub.f32 %v520, %v731
          %v769 = vsub.f32 %v523, %v736
          %v770 = vsub.f32 %v528, %v741
          %v771 = vsub.f32 %v531, %v746
          %v772 = vsub.f32 %v536, %v751
          %v773 = vsub.f32 %v539, %v756
          %v774 = vmul.f32 %v758, 1.442695
          %v775 = vpow.pop %v774
          %v776 = vmul.f32 %v759, 1.442695
          %v777 = vpow.pop %v776
          %v778 = vmul.f32 %v760, 1.442695
          %v779 = vpow.pop %v778
          %v780 = vmul.f32 %v761, 1.442695
          %v781 = vpow.pop %v780
          %v782 = vmul.f32 %v762, 1.442695
          %v783 = vpow.pop %v782
          %v784 = vmul.f32 %v763, 1.442695
          %v785 = vpow.pop %v784
          %v786 = vmul.f32 %v764, 1.442695
          %v787 = vpow.pop %v786
          %v788 = vmul.f32 %v765, 1.442695
          %v789 = vpow.pop %v788
          %v790 = vmul.f32 %v766, 1.442695
          %v791 = vpow.pop %v790
          %v792 = vmul.f32 %v767, 1.442695
          %v793 = vpow.pop %v792
          %v794 = vmul.f32 %v768, 1.442695
          %v795 = vpow.pop %v794
          %v796 = vmul.f32 %v769, 1.442695
          %v797 = vpow.pop %v796
          %v798 = vmul.f32 %v770, 1.442695
          %v799 = vpow.pop %v798
          %v800 = vmul.f32 %v771, 1.442695
          %v801 = vpow.pop %v800
          %v802 = vmul.f32 %v772, 1.442695
          %v803 = vpow.pop %v802
          %v804 = vmul.f32 %v773, 1.442695
          %v805 = vpow.pop %v804
          %v806 = vld [vmem:[#allocation4] sm:$0xff]
          %v807 = vld [vmem:[#allocation4 + $0x8] sm:$0xff]
          %v808 = vld [vmem:[#allocation4 + $0x10] sm:$0xff]
          %v809 = vld [vmem:[#allocation4 + $0x18] sm:$0xff]
          %v810 = vld [vmem:[#allocation4 + $0x20] sm:$0xff]
          %v811 = vld [vmem:[#allocation4 + $0x28] sm:$0xff]
          %v812 = vld [vmem:[#allocation4 + $0x30] sm:$0xff]
          %v813 = vld [vmem:[#allocation4 + $0x38] sm:$0xff]
          %v814 = vld [vmem:[#allocation4 + $0x40] sm:$0xff]
          %v815 = vld [vmem:[#allocation4 + $0x48] sm:$0xff]
          %v816 = vld [vmem:[#allocation4 + $0x50] sm:$0xff]
          %v817 = vld [vmem:[#allocation4 + $0x58] sm:$0xff]
          %v818 = vld [vmem:[#allocation4 + $0x60] sm:$0xff]
          %v819 = vld [vmem:[#allocation4 + $0x68] sm:$0xff]
          %v820 = vld [vmem:[#allocation4 + $0x70] sm:$0xff]
          %v821 = vld [vmem:[#allocation4 + $0x78] sm:$0xff]
          %v822 = vmul.f32 %v647, %v806
          %v823 = vmul.f32 %v649, %v807
          %v824 = vmul.f32 %v651, %v808
          %v825 = vmul.f32 %v653, %v809
          %v826 = vmul.f32 %v655, %v810
          %v827 = vmul.f32 %v657, %v811
          %v828 = vmul.f32 %v659, %v812
          %v829 = vmul.f32 %v661, %v813
          %v830 = vmul.f32 %v663, %v814
          %v831 = vmul.f32 %v665, %v815
          %v832 = vmul.f32 %v667, %v816
          %v833 = vmul.f32 %v669, %v817
          %v834 = vmul.f32 %v671, %v818
          %v835 = vmul.f32 %v673, %v819
          %v836 = vmul.f32 %v675, %v820
          %v837 = vmul.f32 %v677, %v821
          %838 = vadd.xlane.f32.xlu0 %v775
          %v839 = vpop.xlane.xlu0 %838
          %840 = vadd.xlane.f32.xlu0 %v777
          %v841 = vpop.xlane.xlu0 %840
          %842 = vadd.xlane.f32.xlu0 %v779
          %v843 = vpop.xlane.xlu0 %842
          %844 = vadd.xlane.f32.xlu0 %v781
          %v845 = vpop.xlane.xlu0 %844
          %846 = vadd.xlane.f32.xlu0 %v783
          %v847 = vpop.xlane.xlu0 %846
          %848 = vadd.xlane.f32.xlu0 %v785
          %v849 = vpop.xlane.xlu0 %848
          %850 = vadd.xlane.f32.xlu0 %v787
          %v851 = vpop.xlane.xlu0 %850
          %852 = vadd.xlane.f32.xlu0 %v789
          %v853 = vpop.xlane.xlu0 %852
          %854 = vadd.xlane.f32.xlu0 %v791
          %v855 = vpop.xlane.xlu0 %854
          %856 = vadd.xlane.f32.xlu0 %v793
          %v857 = vpop.xlane.xlu0 %856
          %858 = vadd.xlane.f32.xlu0 %v795
          %v859 = vpop.xlane.xlu0 %858
          %860 = vadd.xlane.f32.xlu0 %v797
          %v861 = vpop.xlane.xlu0 %860
          %862 = vadd.xlane.f32.xlu0 %v799
          %v863 = vpop.xlane.xlu0 %862
          %864 = vadd.xlane.f32.xlu0 %v801
          %v865 = vpop.xlane.xlu0 %864
          %866 = vadd.xlane.f32.xlu0 %v803
          %v867 = vpop.xlane.xlu0 %866
          %868 = vadd.xlane.f32.xlu0 %v805
          %v869 = vpop.xlane.xlu0 %868
          %v870 = vadd.f32 %v822, %v839
          %v871 = vadd.f32 %v823, %v841
          %v872 = vadd.f32 %v824, %v843
          %v873 = vadd.f32 %v825, %v845
          %v874 = vadd.f32 %v826, %v847
          %v875 = vadd.f32 %v827, %v849
          %v876 = vadd.f32 %v828, %v851
          %v877 = vadd.f32 %v829, %v853
          %v878 = vadd.f32 %v830, %v855
          %v879 = vadd.f32 %v831, %v857
          %v880 = vadd.f32 %v832, %v859
          %v881 = vadd.f32 %v833, %v861
          %v882 = vadd.f32 %v834, %v863
          %v883 = vadd.f32 %v835, %v865
          %v884 = vadd.f32 %v836, %v867
          %v885 = vadd.f32 %v837, %v869
          %vm886 = vcmask 7168
          %887 = vst.msk [vmem:[#allocation4] sm:$0xff] %vm886, %v870
          %888 = vst.msk [vmem:[#allocation4 + $0x8] sm:$0xff] %vm886, %v871
          %889 = vst.msk [vmem:[#allocation4 + $0x10] sm:$0xff] %vm886, %v872
          %890 = vst.msk [vmem:[#allocation4 + $0x18] sm:$0xff] %vm886, %v873
          %891 = vst.msk [vmem:[#allocation4 + $0x20] sm:$0xff] %vm886, %v874
          %892 = vst.msk [vmem:[#allocation4 + $0x28] sm:$0xff] %vm886, %v875
          %893 = vst.msk [vmem:[#allocation4 + $0x30] sm:$0xff] %vm886, %v876
          %894 = vst.msk [vmem:[#allocation4 + $0x38] sm:$0xff] %vm886, %v877
          %895 = vst.msk [vmem:[#allocation4 + $0x40] sm:$0xff] %vm886, %v878
          %896 = vst.msk [vmem:[#allocation4 + $0x48] sm:$0xff] %vm886, %v879
          %897 = vst.msk [vmem:[#allocation4 + $0x50] sm:$0xff] %vm886, %v880
          %898 = vst.msk [vmem:[#allocation4 + $0x58] sm:$0xff] %vm886, %v881
          %899 = vst.msk [vmem:[#allocation4 + $0x60] sm:$0xff] %vm886, %v882
          %900 = vst.msk [vmem:[#allocation4 + $0x68] sm:$0xff] %vm886, %v883
          %901 = vst.msk [vmem:[#allocation4 + $0x70] sm:$0xff] %vm886, %v884
          %902 = vst.msk [vmem:[#allocation4 + $0x78] sm:$0xff] %vm886, %v885
          %v903 = vld [vmem:[#allocation5] sm:$0xff]
          %v904 = vld [vmem:[#allocation5 + $0x8] sm:$0xff]
          %v905 = vld [vmem:[#allocation5 + $0x10] sm:$0xff]
          %v906 = vld [vmem:[#allocation5 + $0x18] sm:$0xff]
          %v907 = vld [vmem:[#allocation5 + $0x20] sm:$0xff]
          %v908 = vld [vmem:[#allocation5 + $0x28] sm:$0xff]
          %v909 = vld [vmem:[#allocation5 + $0x30] sm:$0xff]
          %v910 = vld [vmem:[#allocation5 + $0x38] sm:$0xff]
          %v911 = vld [vmem:[#allocation5 + $0x40] sm:$0xff]
          %v912 = vld [vmem:[#allocation5 + $0x48] sm:$0xff]
          %v913 = vld [vmem:[#allocation5 + $0x50] sm:$0xff]
          %v914 = vld [vmem:[#allocation5 + $0x58] sm:$0xff]
          %v915 = vld [vmem:[#allocation5 + $0x60] sm:$0xff]
          %v916 = vld [vmem:[#allocation5 + $0x68] sm:$0xff]
          %v917 = vld [vmem:[#allocation5 + $0x70] sm:$0xff]
          %v918 = vld [vmem:[#allocation5 + $0x78] sm:$0xff]
          %920 = vset.pattern.permute.xlu0 0
          %921 = vperm.xlu0 %920, %v647
          %v922 = vpop.permute.xlu0 %921
          %925 = vset.pattern.permute.xlu0 0
          %926 = vperm.xlu0 %925, %v649
          %v927 = vpop.permute.xlu0 %926
          %930 = vset.pattern.permute.xlu0 0
          %931 = vperm.xlu0 %930, %v651
          %v932 = vpop.permute.xlu0 %931
          %935 = vset.pattern.permute.xlu0 0
          %936 = vperm.xlu0 %935, %v653
          %v937 = vpop.permute.xlu0 %936
          %940 = vset.pattern.permute.xlu0 0
          %941 = vperm.xlu0 %940, %v655
          %v942 = vpop.permute.xlu0 %941
          %945 = vset.pattern.permute.xlu0 0
          %946 = vperm.xlu0 %945, %v657
          %v947 = vpop.permute.xlu0 %946
          %950 = vset.pattern.permute.xlu0 0
          %951 = vperm.xlu0 %950, %v659
          %v952 = vpop.permute.xlu0 %951
          %955 = vset.pattern.permute.xlu0 0
          %956 = vperm.xlu0 %955, %v661
          %v957 = vpop.permute.xlu0 %956
          %960 = vset.pattern.permute.xlu0 0
          %961 = vperm.xlu0 %960, %v663
          %v962 = vpop.permute.xlu0 %961
          %965 = vset.pattern.permute.xlu0 0
          %966 = vperm.xlu0 %965, %v665
          %v967 = vpop.permute.xlu0 %966
          %970 = vset.pattern.permute.xlu0 0
          %971 = vperm.xlu0 %970, %v667
          %v972 = vpop.permute.xlu0 %971
          %975 = vset.pattern.permute.xlu0 0
          %976 = vperm.xlu0 %975, %v669
          %v977 = vpop.permute.xlu0 %976
          %980 = vset.pattern.permute.xlu0 0
          %981 = vperm.xlu0 %980, %v671
          %v982 = vpop.permute.xlu0 %981
          %985 = vset.pattern.permute.xlu0 0
          %986 = vperm.xlu0 %985, %v673
          %v987 = vpop.permute.xlu0 %986
          %990 = vset.pattern.permute.xlu0 0
          %991 = vperm.xlu0 %990, %v675
          %v992 = vpop.permute.xlu0 %991
          %995 = vset.pattern.permute.xlu0 0
          %996 = vperm.xlu0 %995, %v677
          %v997 = vpop.permute.xlu0 %996
          %v999 = vmul.f32 %v922, %v903
          %v1000 = vmul.f32 %v927, %v904
          %v1001 = vmul.f32 %v932, %v905
          %v1002 = vmul.f32 %v937, %v906
          %v1003 = vmul.f32 %v942, %v907
          %v1004 = vmul.f32 %v947, %v908
          %v1005 = vmul.f32 %v952, %v909
          %v1006 = vmul.f32 %v957, %v910
          %v1007 = vmul.f32 %v962, %v911
          %v1008 = vmul.f32 %v967, %v912
          %v1009 = vmul.f32 %v972, %v913
          %v1010 = vmul.f32 %v977, %v914
          %v1011 = vmul.f32 %v982, %v915
          %v1012 = vmul.f32 %v987, %v916
          %v1013 = vmul.f32 %v992, %v917
          %v1014 = vmul.f32 %v997, %v918
          %v1015 = vpack.c.bf16 %v777, %v775
          %v1016 = vpack.c.bf16 %v781, %v779
          %v1017 = vpack.c.bf16 %v785, %v783
          %v1018 = vpack.c.bf16 %v789, %v787
          %v1019 = vpack.c.bf16 %v793, %v791
          %v1020 = vpack.c.bf16 %v797, %v795
          %v1021 = vpack.c.bf16 %v801, %v799
          %v1022 = vpack.c.bf16 %v805, %v803
          %1023 = vmatprep.subr.bf16.mxu0 0
          %1024 = vmatpush1.bf16.msra.mxu0 %v558
          %1025 = vmatprep.subr.bf16.mxu0 0
          %1026 = vmatpush1.bf16.msra.mxu0 %v559
          %1027 = vmatprep.subr.bf16.mxu0 0
          %1028 = vmatpush1.bf16.msra.mxu0 %v560
          %1029 = vmatprep.subr.bf16.mxu0 0
          %1030 = vmatpush1.bf16.msra.mxu0 %v561
          %1031 = vmatprep.subr.bf16.mxu0 0
          %1032 = vmatpush1.bf16.msra.mxu0 %v562
          %1033 = vmatprep.subr.bf16.mxu0 0
          %1034 = vmatpush1.bf16.msra.mxu0 %v563
          %1035 = vmatprep.subr.bf16.mxu0 0
          %1036 = vmatpush1.bf16.msra.mxu0 %v564
          %1037 = vmatprep.subr.bf16.mxu0 0
          %1038 = vmatpush1.bf16.msra.mxu0 %v565
          %1039 = vmatprep.subr.bf16.mxu0 0
          %1040 = vmatpush1.bf16.msra.mxu0 0
          %1041 = vmatprep.subr.bf16.mxu0 0
          %1042 = vmatpush1.bf16.msra.mxu0 0
          %1043 = vmatprep.subr.bf16.mxu0 0
          %1044 = vmatpush1.bf16.msra.mxu0 0
          %1045 = vmatprep.subr.bf16.mxu0 0
          %1046 = vmatpush1.bf16.msra.mxu0 0
          %1047 = vmatprep.subr.bf16.mxu0 0
          %1048 = vmatpush1.bf16.msra.mxu0 0
          %1049 = vmatprep.subr.bf16.mxu0 0
          %1050 = vmatpush1.bf16.msra.mxu0 0
          %1051 = vmatprep.subr.bf16.mxu0 0
          %1052 = vmatpush1.bf16.msra.mxu0 0
          %1053 = vmatprep.subr.bf16.mxu0 0
          %1054 = vmatpush1.bf16.msra.mxu0 0
          %1055 = vmatprep.mubr.bf16.mxu0 0
          %1056 = vmatmul.mubr.bf16.gmra.mrb[0].mxu0 %v1015
          %v1057 = vpop.f32.mrb[0].mxu0
          %v1058 = vadd.f32 0.0, %v1057
          %v1059 = vpop.f32.mrb[0].mxu0
          %v1060 = vpop.f32.mrb[0].mxu0
          %v1061 = vadd.f32 0.0, %v1060
          %v1062 = vpop.f32.mrb[0].mxu0
          %1063 = vmatprep.mubr.bf16.mxu0 0
          %1064 = vmatmul.mubr.bf16.gmra.mrb[0].mxu0 %v1016
          %v1065 = vpop.f32.mrb[0].mxu0
          %v1066 = vadd.f32 0.0, %v1065
          %v1067 = vpop.f32.mrb[0].mxu0
          %v1068 = vpop.f32.mrb[0].mxu0
          %v1069 = vadd.f32 0.0, %v1068
          %v1070 = vpop.f32.mrb[0].mxu0
          %1071 = vmatprep.mubr.bf16.mxu0 0
          %1072 = vmatmul.mubr.bf16.gmra.mrb[0].mxu0 %v1017
          %v1073 = vpop.f32.mrb[0].mxu0
          %v1074 = vadd.f32 0.0, %v1073
          %v1075 = vpop.f32.mrb[0].mxu0
          %v1076 = vpop.f32.mrb[0].mxu0
          %v1077 = vadd.f32 0.0, %v1076
          %v1078 = vpop.f32.mrb[0].mxu0
          %1079 = vmatprep.mubr.bf16.mxu0 0
          %1080 = vmatmul.mubr.bf16.gmra.mrb[0].mxu0 %v1018
          %v1081 = vpop.f32.mrb[0].mxu0
          %v1082 = vadd.f32 0.0, %v1081
          %v1083 = vpop.f32.mrb[0].mxu0
          %v1084 = vpop.f32.mrb[0].mxu0
          %v1085 = vadd.f32 0.0, %v1084
          %v1086 = vpop.f32.mrb[0].mxu0
          %1087 = vmatprep.mubr.bf16.mxu0 0
          %1088 = vmatmul.mubr.bf16.gmra.mrb[0].mxu0 %v1019
          %v1089 = vpop.f32.mrb[0].mxu0
          %v1090 = vadd.f32 0.0, %v1089
          %v1091 = vpop.f32.mrb[0].mxu0
          %v1092 = vpop.f32.mrb[0].mxu0
          %v1093 = vadd.f32 0.0, %v1092
          %v1094 = vpop.f32.mrb[0].mxu0
          %1095 = vmatprep.mubr.bf16.mxu0 0
          %1096 = vmatmul.mubr.bf16.gmra.mrb[0].mxu0 %v1020
          %v1097 = vpop.f32.mrb[0].mxu0
          %v1098 = vadd.f32 0.0, %v1097
          %v1099 = vpop.f32.mrb[0].mxu0
          %v1100 = vpop.f32.mrb[0].mxu0
          %v1101 = vadd.f32 0.0, %v1100
          %v1102 = vpop.f32.mrb[0].mxu0
          %1103 = vmatprep.mubr.bf16.mxu0 0
          %1104 = vmatmul.mubr.bf16.gmra.mrb[0].mxu0 %v1021
          %v1105 = vpop.f32.mrb[0].mxu0
          %v1106 = vadd.f32 0.0, %v1105
          %v1107 = vpop.f32.mrb[0].mxu0
          %v1108 = vpop.f32.mrb[0].mxu0
          %v1109 = vadd.f32 0.0, %v1108
          %v1110 = vpop.f32.mrb[0].mxu0
          %1111 = vmatprep.mubr.bf16.mxu0 0
          %1112 = vmatmul.mubr.bf16.gmra.mrb[0].mxu0 %v1022
          %v1113 = vpop.f32.mrb[0].mxu0
          %v1114 = vadd.f32 0.0, %v1113
          %v1115 = vpop.f32.mrb[0].mxu0
          %v1116 = vpop.f32.mrb[0].mxu0
          %v1117 = vadd.f32 0.0, %v1116
          %v1118 = vpop.f32.mrb[0].mxu0
          %1119 = vdwg.mxu0
          %v1120 = vadd.f32 %v999, %v1058
          %v1121 = vadd.f32 %v1000, %v1061
          %v1122 = vadd.f32 %v1001, %v1066
          %v1123 = vadd.f32 %v1002, %v1069
          %v1124 = vadd.f32 %v1003, %v1074
          %v1125 = vadd.f32 %v1004, %v1077
          %v1126 = vadd.f32 %v1005, %v1082
          %v1127 = vadd.f32 %v1006, %v1085
          %v1128 = vadd.f32 %v1007, %v1090
          %v1129 = vadd.f32 %v1008, %v1093
          %v1130 = vadd.f32 %v1009, %v1098
          %v1131 = vadd.f32 %v1010, %v1101
          %v1132 = vadd.f32 %v1011, %v1106
          %v1133 = vadd.f32 %v1012, %v1109
          %v1134 = vadd.f32 %v1013, %v1114
          %v1135 = vadd.f32 %v1014, %v1117
          %1136 = vst [vmem:[#allocation5] sm:$0xff] %v1120
          %1137 = vst [vmem:[#allocation5 + $0x8] sm:$0xff] %v1121
          %1138 = vst [vmem:[#allocation5 + $0x10] sm:$0xff] %v1122
          %1139 = vst [vmem:[#allocation5 + $0x18] sm:$0xff] %v1123
          %1140 = vst [vmem:[#allocation5 + $0x20] sm:$0xff] %v1124
          %1141 = vst [vmem:[#allocation5 + $0x28] sm:$0xff] %v1125
          %1142 = vst [vmem:[#allocation5 + $0x30] sm:$0xff] %v1126
          %1143 = vst [vmem:[#allocation5 + $0x38] sm:$0xff] %v1127
          %1144 = vst [vmem:[#allocation5 + $0x40] sm:$0xff] %v1128
          %1145 = vst [vmem:[#allocation5 + $0x48] sm:$0xff] %v1129
          %1146 = vst [vmem:[#allocation5 + $0x50] sm:$0xff] %v1130
          %1147 = vst [vmem:[#allocation5 + $0x58] sm:$0xff] %v1131
          %1148 = vst [vmem:[#allocation5 + $0x60] sm:$0xff] %v1132
          %1149 = vst [vmem:[#allocation5 + $0x68] sm:$0xff] %v1133
          %1150 = vst [vmem:[#allocation5 + $0x70] sm:$0xff] %v1134
          %1151 = vst [vmem:[#allocation5 + $0x78] sm:$0xff] %v1135
          %1152 = vst.msk [vmem:[#allocation3] sm:$0xff] %vm886, %v614
          %1153 = vst.msk [vmem:[#allocation3 + $0x8] sm:$0xff] %vm886, %v615
          %1154 = vst.msk [vmem:[#allocation3 + $0x10] sm:$0xff] %vm886, %v616
          %1155 = vst.msk [vmem:[#allocation3 + $0x18] sm:$0xff] %vm886, %v617
          %1156 = vst.msk [vmem:[#allocation3 + $0x20] sm:$0xff] %vm886, %v618
          %1157 = vst.msk [vmem:[#allocation3 + $0x28] sm:$0xff] %vm886, %v619
          %1158 = vst.msk [vmem:[#allocation3 + $0x30] sm:$0xff] %vm886, %v620
          %1159 = vst.msk [vmem:[#allocation3 + $0x38] sm:$0xff] %vm886, %v621
          %1160 = vst.msk [vmem:[#allocation3 + $0x40] sm:$0xff] %vm886, %v622
          %1161 = vst.msk [vmem:[#allocation3 + $0x48] sm:$0xff] %vm886, %v623
          %1162 = vst.msk [vmem:[#allocation3 + $0x50] sm:$0xff] %vm886, %v624
          %1163 = vst.msk [vmem:[#allocation3 + $0x58] sm:$0xff] %vm886, %v625
          %1164 = vst.msk [vmem:[#allocation3 + $0x60] sm:$0xff] %vm886, %v626
          %1165 = vst.msk [vmem:[#allocation3 + $0x68] sm:$0xff] %vm886, %v627
          %1166 = vst.msk [vmem:[#allocation3 + $0x70] sm:$0xff] %vm886, %v628
          %1167 = vst.msk [vmem:[#allocation3 + $0x78] sm:$0xff] %vm886, %v629
        $region52: #{tpu_custom_call.1} parent=31 // pred_fallthru
          _
        %p1168 = scmp.gt.s32.totalorder %s408, %s405
        %p1169 = scmp.le.s32.totalorder %s407, %s406
        %p1170 = pnand %p1168, %p1169
        %p1171 = pneg %p1170
        // Predicated region
        $region53: #{tpu_custom_call.1} parent=31 // pred_check
          _
        $region54: #{tpu_custom_call.1} parent=31 // pred_check_branch
          %1173 = sbr.rel (%p1170) target = $region56
        $region55: #{tpu_custom_call.1} parent=31 // pred_region
          %v1174 = vld [vmem:[%s257] sm:$0xff]
          %v1175 = vld [vmem:[%s257 + $0x8] sm:$0xff]
          %v1176 = vld [vmem:[%s257 + $0x10] sm:$0xff]
          %v1177 = vld [vmem:[%s257 + $0x18] sm:$0xff]
          %v1178 = vld [vmem:[%s257 + $0x20] sm:$0xff]
          %v1179 = vld [vmem:[%s257 + $0x28] sm:$0xff]
          %v1180 = vld [vmem:[%s257 + $0x30] sm:$0xff]
          %v1181 = vld [vmem:[%s257 + $0x38] sm:$0xff]
          %v1182 = vld [vmem:[%s257 + $0x40] sm:$0xff]
          %v1183 = vld [vmem:[%s257 + $0x48] sm:$0xff]
          %v1184 = vld [vmem:[%s257 + $0x50] sm:$0xff]
          %v1185 = vld [vmem:[%s257 + $0x58] sm:$0xff]
          %v1186 = vld [vmem:[%s257 + $0x60] sm:$0xff]
          %v1187 = vld [vmem:[%s257 + $0x68] sm:$0xff]
          %v1188 = vld [vmem:[%s257 + $0x70] sm:$0xff]
          %v1189 = vld [vmem:[%s257 + $0x78] sm:$0xff]
          %v1190 = vpack.c.bf16 %v1175, %v1174
          %v1191 = vpack.c.bf16 %v1177, %v1176
          %v1192 = vpack.c.bf16 %v1179, %v1178
          %v1193 = vpack.c.bf16 %v1181, %v1180
          %v1194 = vpack.c.bf16 %v1183, %v1182
          %v1195 = vpack.c.bf16 %v1185, %v1184
          %v1196 = vpack.c.bf16 %v1187, %v1186
          %v1197 = vpack.c.bf16 %v1189, %v1188
          %v1198 = vld [vmem:[#allocation2] sm:$0xff]
          %v1199 = vld [vmem:[#allocation2 + $0x8] sm:$0xff]
          %v1200 = vld [vmem:[#allocation2 + $0x10] sm:$0xff]
          %v1201 = vld [vmem:[#allocation2 + $0x18] sm:$0xff]
          %v1202 = vld [vmem:[#allocation2 + $0x20] sm:$0xff]
          %v1203 = vld [vmem:[#allocation2 + $0x28] sm:$0xff]
          %v1204 = vld [vmem:[#allocation2 + $0x30] sm:$0xff]
          %v1205 = vld [vmem:[#allocation2 + $0x38] sm:$0xff]
          %1206 = vmatprep.subr.bf16.mxu0 0
          %1207 = vmatpush1.bf16.xpose.msra.mxu0 %v1190
          %1208 = vmatprep.subr.bf16.mxu0 0
          %1209 = vmatpush1.bf16.xpose.msra.mxu0 %v1191
          %1210 = vmatprep.subr.bf16.mxu0 0
          %1211 = vmatpush1.bf16.xpose.msra.mxu0 %v1192
          %1212 = vmatprep.subr.bf16.mxu0 0
          %1213 = vmatpush1.bf16.xpose.msra.mxu0 %v1193
          %1214 = vmatprep.subr.bf16.mxu0 0
          %1215 = vmatpush1.bf16.xpose.msra.mxu0 %v1194
          %1216 = vmatprep.subr.bf16.mxu0 0
          %1217 = vmatpush1.bf16.xpose.msra.mxu0 %v1195
          %1218 = vmatprep.subr.bf16.mxu0 0
          %1219 = vmatpush1.bf16.xpose.msra.mxu0 %v1196
          %1220 = vmatprep.subr.bf16.mxu0 0
          %1221 = vmatpush1.bf16.xpose.msra.mxu0 %v1197
          %1222 = vmatprep.subr.bf16.mxu0 0
          %1223 = vmatpush1.bf16.xpose.msra.mxu0 0
          %1224 = vmatprep.subr.bf16.mxu0 0
          %1225 = vmatpush1.bf16.xpose.msra.mxu0 0
          %1226 = vmatprep.subr.bf16.mxu0 0
          %1227 = vmatpush1.bf16.xpose.msra.mxu0 0
          %1228 = vmatprep.subr.bf16.mxu0 0
          %1229 = vmatpush1.bf16.xpose.msra.mxu0 0
          %1230 = vmatprep.subr.bf16.mxu0 0
          %1231 = vmatpush1.bf16.xpose.msra.mxu0 0
          %1232 = vmatprep.subr.bf16.mxu0 0
          %1233 = vmatpush1.bf16.xpose.msra.mxu0 0
          %1234 = vmatprep.subr.bf16.mxu0 0
          %1235 = vmatpush1.bf16.xpose.msra.mxu0 0
          %1236 = vmatprep.subr.bf16.mxu0 0
          %1237 = vmatpush1.bf16.xpose.msra.mxu0 0
          %1238 = vmatprep.mubr.bf16.mxu0 0
          %1239 = vmatmul.mubr.bf16.gmra.mrb[0].mxu0 %v1198
          %v1240 = vpop.f32.mrb[0].mxu0
          %v1241 = vadd.f32 0.0, %v1240
          %v1242 = vpop.f32.mrb[0].mxu0
          %v1243 = vpop.f32.mrb[0].mxu0
          %v1244 = vadd.f32 0.0, %v1243
          %v1245 = vpop.f32.mrb[0].mxu0
          %1246 = vmatprep.mubr.bf16.mxu0 0
          %1247 = vmatmul.mubr.bf16.gmra.mrb[0].mxu0 %v1199
          %v1248 = vpop.f32.mrb[0].mxu0
          %v1249 = vadd.f32 0.0, %v1248
          %v1250 = vpop.f32.mrb[0].mxu0
          %v1251 = vpop.f32.mrb[0].mxu0
          %v1252 = vadd.f32 0.0, %v1251
          %v1253 = vpop.f32.mrb[0].mxu0
          %1254 = vmatprep.mubr.bf16.mxu0 0
          %1255 = vmatmul.mubr.bf16.gmra.mrb[0].mxu0 %v1200
          %v1256 = vpop.f32.mrb[0].mxu0
          %v1257 = vadd.f32 0.0, %v1256
          %v1258 = vpop.f32.mrb[0].mxu0
          %v1259 = vpop.f32.mrb[0].mxu0
          %v1260 = vadd.f32 0.0, %v1259
          %v1261 = vpop.f32.mrb[0].mxu0
          %1262 = vmatprep.mubr.bf16.mxu0 0
          %1263 = vmatmul.mubr.bf16.gmra.mrb[0].mxu0 %v1201
          %v1264 = vpop.f32.mrb[0].mxu0
          %v1265 = vadd.f32 0.0, %v1264
          %v1266 = vpop.f32.mrb[0].mxu0
          %v1267 = vpop.f32.mrb[0].mxu0
          %v1268 = vadd.f32 0.0, %v1267
          %v1269 = vpop.f32.mrb[0].mxu0
          %1270 = vmatprep.mubr.bf16.mxu0 0
          %1271 = vmatmul.mubr.bf16.gmra.mrb[0].mxu0 %v1202
          %v1272 = vpop.f32.mrb[0].mxu0
          %v1273 = vadd.f32 0.0, %v1272
          %v1274 = vpop.f32.mrb[0].mxu0
          %v1275 = vpop.f32.mrb[0].mxu0
          %v1276 = vadd.f32 0.0, %v1275
          %v1277 = vpop.f32.mrb[0].mxu0
          %1278 = vmatprep.mubr.bf16.mxu0 0
          %1279 = vmatmul.mubr.bf16.gmra.mrb[0].mxu0 %v1203
          %v1280 = vpop.f32.mrb[0].mxu0
          %v1281 = vadd.f32 0.0, %v1280
          %v1282 = vpop.f32.mrb[0].mxu0
          %v1283 = vpop.f32.mrb[0].mxu0
          %v1284 = vadd.f32 0.0, %v1283
          %v1285 = vpop.f32.mrb[0].mxu0
          %1286 = vmatprep.mubr.bf16.mxu0 0
          %1287 = vmatmul.mubr.bf16.gmra.mrb[0].mxu0 %v1204
          %v1288 = vpop.f32.mrb[0].mxu0
          %v1289 = vadd.f32 0.0, %v1288
          %v1290 = vpop.f32.mrb[0].mxu0
          %v1291 = vpop.f32.mrb[0].mxu0
          %v1292 = vadd.f32 0.0, %v1291
          %v1293 = vpop.f32.mrb[0].mxu0
          %1294 = vmatprep.mubr.bf16.mxu0 0
          %1295 = vmatmul.mubr.bf16.gmra.mrb[0].mxu0 %v1205
          %v1296 = vpop.f32.mrb[0].mxu0
          %v1297 = vadd.f32 0.0, %v1296
          %v1298 = vpop.f32.mrb[0].mxu0
          %v1299 = vpop.f32.mrb[0].mxu0
          %v1300 = vadd.f32 0.0, %v1299
          %v1301 = vpop.f32.mrb[0].mxu0
          %1302 = vdwg.mxu0
          %v1303 = vlaneseq
          %v1304 = vshrl.u32 %v1303, 7
          %v1305 = vadd.s32 %v1304, 8
          %v1306 = vadd.s32 %v1304, 16
          %v1307 = vadd.s32 %v1304, 24
          %v1308 = vadd.s32 %v1304, 32
          %v1309 = vadd.s32 %v1304, 40
          %v1310 = vadd.s32 %v1304, 48
          %v1311 = vadd.s32 %v1304, 56
          %v1312 = vadd.s32 %v1304, 64
          %v1313 = vadd.s32 %v1304, 72
          %v1314 = vadd.s32 %v1304, 80
          %v1315 = vadd.s32 %v1304, 88
          %v1316 = vadd.s32 %v1304, 96
          %v1317 = vadd.s32 %v1304, 104
          %v1318 = vadd.s32 %v1304, 112
          %v1319 = vadd.s32 %v1304, 120
          %v1320 = vstv %s405
          %v1321 = vadd.s32 %v1320, %v1304
          %v1322 = vadd.s32 %v1320, %v1305
          %v1323 = vadd.s32 %v1320, %v1306
          %v1324 = vadd.s32 %v1320, %v1307
          %v1325 = vadd.s32 %v1320, %v1308
          %v1326 = vadd.s32 %v1320, %v1309
          %v1327 = vadd.s32 %v1320, %v1310
          %v1328 = vadd.s32 %v1320, %v1311
          %v1329 = vadd.s32 %v1320, %v1312
          %v1330 = vadd.s32 %v1320, %v1313
          %v1331 = vadd.s32 %v1320, %v1314
          %v1332 = vadd.s32 %v1320, %v1315
          %v1333 = vadd.s32 %v1320, %v1316
          %v1334 = vadd.s32 %v1320, %v1317
          %v1335 = vadd.s32 %v1320, %v1318
          %v1336 = vadd.s32 %v1320, %v1319
          %v1337 = vlaneseq
          %v1338 = vand.u32 %v1337, 127
          %v1339 = vstv %s407
          %v1340 = vadd.s32 %v1339, %v1338
          %vm1341 = vcmp.gt.s32.totalorder %v1340, %v1321
          %vm1342 = vcmp.gt.s32.totalorder %v1340, %v1322
          %vm1343 = vcmp.gt.s32.totalorder %v1340, %v1323
          %vm1344 = vcmp.gt.s32.totalorder %v1340, %v1324
          %vm1345 = vcmp.gt.s32.totalorder %v1340, %v1325
          %vm1346 = vcmp.gt.s32.totalorder %v1340, %v1326
          %vm1347 = vcmp.gt.s32.totalorder %v1340, %v1327
          %vm1348 = vcmp.gt.s32.totalorder %v1340, %v1328
          %vm1349 = vcmp.gt.s32.totalorder %v1340, %v1329
          %vm1350 = vcmp.gt.s32.totalorder %v1340, %v1330
          %vm1351 = vcmp.gt.s32.totalorder %v1340, %v1331
          %vm1352 = vcmp.gt.s32.totalorder %v1340, %v1332
          %vm1353 = vcmp.gt.s32.totalorder %v1340, %v1333
          %vm1354 = vcmp.gt.s32.totalorder %v1340, %v1334
          %vm1355 = vcmp.gt.s32.totalorder %v1340, %v1335
          %vm1356 = vcmp.gt.s32.totalorder %v1340, %v1336
          %v1357 = vsel %vm1341, -10000000.0, %v1241
          %v1358 = vsel %vm1342, -10000000.0, %v1244
          %v1359 = vsel %vm1343, -10000000.0, %v1249
          %v1360 = vsel %vm1344, -10000000.0, %v1252
          %v1361 = vsel %vm1345, -10000000.0, %v1257
          %v1362 = vsel %vm1346, -10000000.0, %v1260
          %v1363 = vsel %vm1347, -10000000.0, %v1265
          %v1364 = vsel %vm1348, -10000000.0, %v1268
          %v1365 = vsel %vm1349, -10000000.0, %v1273
          %v1366 = vsel %vm1350, -10000000.0, %v1276
          %v1367 = vsel %vm1351, -10000000.0, %v1281
          %v1368 = vsel %vm1352, -10000000.0, %v1284
          %v1369 = vsel %vm1353, -10000000.0, %v1289
          %v1370 = vsel %vm1354, -10000000.0, %v1292
          %v1371 = vsel %vm1355, -10000000.0, %v1297
          %v1372 = vsel %vm1356, -10000000.0, %v1300
          %v1373 = vld [vmem:[%s266] sm:$0xff]
          %v1374 = vld [vmem:[%s266 + $0x8] sm:$0xff]
          %v1375 = vld [vmem:[%s266 + $0x10] sm:$0xff]
          %v1376 = vld [vmem:[%s266 + $0x18] sm:$0xff]
          %v1377 = vld [vmem:[%s266 + $0x20] sm:$0xff]
          %v1378 = vld [vmem:[%s266 + $0x28] sm:$0xff]
          %v1379 = vld [vmem:[%s266 + $0x30] sm:$0xff]
          %v1380 = vld [vmem:[%s266 + $0x38] sm:$0xff]
          %v1381 = vld [vmem:[%s266 + $0x40] sm:$0xff]
          %v1382 = vld [vmem:[%s266 + $0x48] sm:$0xff]
          %v1383 = vld [vmem:[%s266 + $0x50] sm:$0xff]
          %v1384 = vld [vmem:[%s266 + $0x58] sm:$0xff]
          %v1385 = vld [vmem:[%s266 + $0x60] sm:$0xff]
          %v1386 = vld [vmem:[%s266 + $0x68] sm:$0xff]
          %v1387 = vld [vmem:[%s266 + $0x70] sm:$0xff]
          %v1388 = vld [vmem:[%s266 + $0x78] sm:$0xff]
          %v1389 = vpack.c.bf16 %v1374, %v1373
          %v1390 = vpack.c.bf16 %v1376, %v1375
          %v1391 = vpack.c.bf16 %v1378, %v1377
          %v1392 = vpack.c.bf16 %v1380, %v1379
          %v1393 = vpack.c.bf16 %v1382, %v1381
          %v1394 = vpack.c.bf16 %v1384, %v1383
          %v1395 = vpack.c.bf16 %v1386, %v1385
          %v1396 = vpack.c.bf16 %v1388, %v1387
          %v1397 = vld [vmem:[#allocation3] sm:$0xff]
          %v1398 = vld [vmem:[#allocation3 + $0x8] sm:$0xff]
          %v1399 = vld [vmem:[#allocation3 + $0x10] sm:$0xff]
          %v1400 = vld [vmem:[#allocation3 + $0x18] sm:$0xff]
          %v1401 = vld [vmem:[#allocation3 + $0x20] sm:$0xff]
          %v1402 = vld [vmem:[#allocation3 + $0x28] sm:$0xff]
          %v1403 = vld [vmem:[#allocation3 + $0x30] sm:$0xff]
          %v1404 = vld [vmem:[#allocation3 + $0x38] sm:$0xff]
          %v1405 = vld [vmem:[#allocation3 + $0x40] sm:$0xff]
          %v1406 = vld [vmem:[#allocation3 + $0x48] sm:$0xff]
          %v1407 = vld [vmem:[#allocation3 + $0x50] sm:$0xff]
          %v1408 = vld [vmem:[#allocation3 + $0x58] sm:$0xff]
          %v1409 = vld [vmem:[#allocation3 + $0x60] sm:$0xff]
          %v1410 = vld [vmem:[#allocation3 + $0x68] sm:$0xff]
          %v1411 = vld [vmem:[#allocation3 + $0x70] sm:$0xff]
          %v1412 = vld [vmem:[#allocation3 + $0x78] sm:$0xff]
          %1413 = vmax.xlane.f32.xlu0 %v1357
          %v1414 = vpop.xlane.xlu0 %1413
          %1415 = vmax.xlane.f32.xlu0 %v1358
          %v1416 = vpop.xlane.xlu0 %1415
          %1417 = vmax.xlane.f32.xlu0 %v1359
          %v1418 = vpop.xlane.xlu0 %1417
          %1419 = vmax.xlane.f32.xlu0 %v1360
          %v1420 = vpop.xlane.xlu0 %1419
          %1421 = vmax.xlane.f32.xlu0 %v1361
          %v1422 = vpop.xlane.xlu0 %1421
          %1423 = vmax.xlane.f32.xlu0 %v1362
          %v1424 = vpop.xlane.xlu0 %1423
          %1425 = vmax.xlane.f32.xlu0 %v1363
          %v1426 = vpop.xlane.xlu0 %1425
          %1427 = vmax.xlane.f32.xlu0 %v1364
          %v1428 = vpop.xlane.xlu0 %1427
          %1429 = vmax.xlane.f32.xlu0 %v1365
          %v1430 = vpop.xlane.xlu0 %1429
          %1431 = vmax.xlane.f32.xlu0 %v1366
          %v1432 = vpop.xlane.xlu0 %1431
          %1433 = vmax.xlane.f32.xlu0 %v1367
          %v1434 = vpop.xlane.xlu0 %1433
          %1435 = vmax.xlane.f32.xlu0 %v1368
          %v1436 = vpop.xlane.xlu0 %1435
          %1437 = vmax.xlane.f32.xlu0 %v1369
          %v1438 = vpop.xlane.xlu0 %1437
          %1439 = vmax.xlane.f32.xlu0 %v1370
          %v1440 = vpop.xlane.xlu0 %1439
          %1441 = vmax.xlane.f32.xlu0 %v1371
          %v1442 = vpop.xlane.xlu0 %1441
          %1443 = vmax.xlane.f32.xlu0 %v1372
          %v1444 = vpop.xlane.xlu0 %1443
          %v1445 = vmax.f32 %v1397, %v1414
          %v1446 = vmax.f32 %v1398, %v1416
          %v1447 = vmax.f32 %v1399, %v1418
          %v1448 = vmax.f32 %v1400, %v1420
          %v1449 = vmax.f32 %v1401, %v1422
          %v1450 = vmax.f32 %v1402, %v1424
          %v1451 = vmax.f32 %v1403, %v1426
          %v1452 = vmax.f32 %v1404, %v1428
          %v1453 = vmax.f32 %v1405, %v1430
          %v1454 = vmax.f32 %v1406, %v1432
          %v1455 = vmax.f32 %v1407, %v1434
          %v1456 = vmax.f32 %v1408, %v1436
          %v1457 = vmax.f32 %v1409, %v1438
          %v1458 = vmax.f32 %v1410, %v1440
          %v1459 = vmax.f32 %v1411, %v1442
          %v1460 = vmax.f32 %v1412, %v1444
          %v1461 = vsub.f32 %v1397, %v1445
          %v1462 = vsub.f32 %v1398, %v1446
          %v1463 = vsub.f32 %v1399, %v1447
          %v1464 = vsub.f32 %v1400, %v1448
          %v1465 = vsub.f32 %v1401, %v1449
          %v1466 = vsub.f32 %v1402, %v1450
          %v1467 = vsub.f32 %v1403, %v1451
          %v1468 = vsub.f32 %v1404, %v1452
          %v1469 = vsub.f32 %v1405, %v1453
          %v1470 = vsub.f32 %v1406, %v1454
          %v1471 = vsub.f32 %v1407, %v1455
          %v1472 = vsub.f32 %v1408, %v1456
          %v1473 = vsub.f32 %v1409, %v1457
          %v1474 = vsub.f32 %v1410, %v1458
          %v1475 = vsub.f32 %v1411, %v1459
          %v1476 = vsub.f32 %v1412, %v1460
          %v1477 = vmul.f32 %v1461, 1.442695
          %v1478 = vpow.pop %v1477
          %v1479 = vmul.f32 %v1462, 1.442695
          %v1480 = vpow.pop %v1479
          %v1481 = vmul.f32 %v1463, 1.442695
          %v1482 = vpow.pop %v1481
          %v1483 = vmul.f32 %v1464, 1.442695
          %v1484 = vpow.pop %v1483
          %v1485 = vmul.f32 %v1465, 1.442695
          %v1486 = vpow.pop %v1485
          %v1487 = vmul.f32 %v1466, 1.442695
          %v1488 = vpow.pop %v1487
          %v1489 = vmul.f32 %v1467, 1.442695
          %v1490 = vpow.pop %v1489
          %v1491 = vmul.f32 %v1468, 1.442695
          %v1492 = vpow.pop %v1491
          %v1493 = vmul.f32 %v1469, 1.442695
          %v1494 = vpow.pop %v1493
          %v1495 = vmul.f32 %v1470, 1.442695
          %v1496 = vpow.pop %v1495
          %v1497 = vmul.f32 %v1471, 1.442695
          %v1498 = vpow.pop %v1497
          %v1499 = vmul.f32 %v1472, 1.442695
          %v1500 = vpow.pop %v1499
          %v1501 = vmul.f32 %v1473, 1.442695
          %v1502 = vpow.pop %v1501
          %v1503 = vmul.f32 %v1474, 1.442695
          %v1504 = vpow.pop %v1503
          %v1505 = vmul.f32 %v1475, 1.442695
          %v1506 = vpow.pop %v1505
          %v1507 = vmul.f32 %v1476, 1.442695
          %v1508 = vpow.pop %v1507
          %1510 = vset.pattern.permute.xlu0 0
          %1511 = vperm.xlu0 %1510, %v1445
          %v1512 = vpop.permute.xlu0 %1511
          %1515 = vset.pattern.permute.xlu0 0
          %1516 = vperm.xlu0 %1515, %v1446
          %v1517 = vpop.permute.xlu0 %1516
          %1520 = vset.pattern.permute.xlu0 0
          %1521 = vperm.xlu0 %1520, %v1447
          %v1522 = vpop.permute.xlu0 %1521
          %1525 = vset.pattern.permute.xlu0 0
          %1526 = vperm.xlu0 %1525, %v1448
          %v1527 = vpop.permute.xlu0 %1526
          %1530 = vset.pattern.permute.xlu0 0
          %1531 = vperm.xlu0 %1530, %v1449
          %v1532 = vpop.permute.xlu0 %1531
          %1535 = vset.pattern.permute.xlu0 0
          %1536 = vperm.xlu0 %1535, %v1450
          %v1537 = vpop.permute.xlu0 %1536
          %1540 = vset.pattern.permute.xlu0 0
          %1541 = vperm.xlu0 %1540, %v1451
          %v1542 = vpop.permute.xlu0 %1541
          %1545 = vset.pattern.permute.xlu0 0
          %1546 = vperm.xlu0 %1545, %v1452
          %v1547 = vpop.permute.xlu0 %1546
          %1550 = vset.pattern.permute.xlu0 0
          %1551 = vperm.xlu0 %1550, %v1453
          %v1552 = vpop.permute.xlu0 %1551
          %1555 = vset.pattern.permute.xlu0 0
          %1556 = vperm.xlu0 %1555, %v1454
          %v1557 = vpop.permute.xlu0 %1556
          %1560 = vset.pattern.permute.xlu0 0
          %1561 = vperm.xlu0 %1560, %v1455
          %v1562 = vpop.permute.xlu0 %1561
          %1565 = vset.pattern.permute.xlu0 0
          %1566 = vperm.xlu0 %1565, %v1456
          %v1567 = vpop.permute.xlu0 %1566
          %1570 = vset.pattern.permute.xlu0 0
          %1571 = vperm.xlu0 %1570, %v1457
          %v1572 = vpop.permute.xlu0 %1571
          %1575 = vset.pattern.permute.xlu0 0
          %1576 = vperm.xlu0 %1575, %v1458
          %v1577 = vpop.permute.xlu0 %1576
          %1580 = vset.pattern.permute.xlu0 0
          %1581 = vperm.xlu0 %1580, %v1459
          %v1582 = vpop.permute.xlu0 %1581
          %1585 = vset.pattern.permute.xlu0 0
          %1586 = vperm.xlu0 %1585, %v1460
          %v1587 = vpop.permute.xlu0 %1586
          %v1589 = vsub.f32 %v1357, %v1512
          %v1590 = vsub.f32 %v1358, %v1517
          %v1591 = vsub.f32 %v1359, %v1522
          %v1592 = vsub.f32 %v1360, %v1527
          %v1593 = vsub.f32 %v1361, %v1532
          %v1594 = vsub.f32 %v1362, %v1537
          %v1595 = vsub.f32 %v1363, %v1542
          %v1596 = vsub.f32 %v1364, %v1547
          %v1597 = vsub.f32 %v1365, %v1552
          %v1598 = vsub.f32 %v1366, %v1557
          %v1599 = vsub.f32 %v1367, %v1562
          %v1600 = vsub.f32 %v1368, %v1567
          %v1601 = vsub.f32 %v1369, %v1572
          %v1602 = vsub.f32 %v1370, %v1577
          %v1603 = vsub.f32 %v1371, %v1582
          %v1604 = vsub.f32 %v1372, %v1587
          %v1605 = vmul.f32 %v1589, 1.442695
          %v1606 = vpow.pop %v1605
          %v1607 = vmul.f32 %v1590, 1.442695
          %v1608 = vpow.pop %v1607
          %v1609 = vmul.f32 %v1591, 1.442695
          %v1610 = vpow.pop %v1609
          %v1611 = vmul.f32 %v1592, 1.442695
          %v1612 = vpow.pop %v1611
          %v1613 = vmul.f32 %v1593, 1.442695
          %v1614 = vpow.pop %v1613
          %v1615 = vmul.f32 %v1594, 1.442695
          %v1616 = vpow.pop %v1615
          %v1617 = vmul.f32 %v1595, 1.442695
          %v1618 = vpow.pop %v1617
          %v1619 = vmul.f32 %v1596, 1.442695
          %v1620 = vpow.pop %v1619
          %v1621 = vmul.f32 %v1597, 1.442695
          %v1622 = vpow.pop %v1621
          %v1623 = vmul.f32 %v1598, 1.442695
          %v1624 = vpow.pop %v1623
          %v1625 = vmul.f32 %v1599, 1.442695
          %v1626 = vpow.pop %v1625
          %v1627 = vmul.f32 %v1600, 1.442695
          %v1628 = vpow.pop %v1627
          %v1629 = vmul.f32 %v1601, 1.442695
          %v1630 = vpow.pop %v1629
          %v1631 = vmul.f32 %v1602, 1.442695
          %v1632 = vpow.pop %v1631
          %v1633 = vmul.f32 %v1603, 1.442695
          %v1634 = vpow.pop %v1633
          %v1635 = vmul.f32 %v1604, 1.442695
          %v1636 = vpow.pop %v1635
          %v1637 = vld [vmem:[#allocation4] sm:$0xff]
          %v1638 = vld [vmem:[#allocation4 + $0x8] sm:$0xff]
          %v1639 = vld [vmem:[#allocation4 + $0x10] sm:$0xff]
          %v1640 = vld [vmem:[#allocation4 + $0x18] sm:$0xff]
          %v1641 = vld [vmem:[#allocation4 + $0x20] sm:$0xff]
          %v1642 = vld [vmem:[#allocation4 + $0x28] sm:$0xff]
          %v1643 = vld [vmem:[#allocation4 + $0x30] sm:$0xff]
          %v1644 = vld [vmem:[#allocation4 + $0x38] sm:$0xff]
          %v1645 = vld [vmem:[#allocation4 + $0x40] sm:$0xff]
          %v1646 = vld [vmem:[#allocation4 + $0x48] sm:$0xff]
          %v1647 = vld [vmem:[#allocation4 + $0x50] sm:$0xff]
          %v1648 = vld [vmem:[#allocation4 + $0x58] sm:$0xff]
          %v1649 = vld [vmem:[#allocation4 + $0x60] sm:$0xff]
          %v1650 = vld [vmem:[#allocation4 + $0x68] sm:$0xff]
          %v1651 = vld [vmem:[#allocation4 + $0x70] sm:$0xff]
          %v1652 = vld [vmem:[#allocation4 + $0x78] sm:$0xff]
          %v1653 = vmul.f32 %v1478, %v1637
          %v1654 = vmul.f32 %v1480, %v1638
          %v1655 = vmul.f32 %v1482, %v1639
          %v1656 = vmul.f32 %v1484, %v1640
          %v1657 = vmul.f32 %v1486, %v1641
          %v1658 = vmul.f32 %v1488, %v1642
          %v1659 = vmul.f32 %v1490, %v1643
          %v1660 = vmul.f32 %v1492, %v1644
          %v1661 = vmul.f32 %v1494, %v1645
          %v1662 = vmul.f32 %v1496, %v1646
          %v1663 = vmul.f32 %v1498, %v1647
          %v1664 = vmul.f32 %v1500, %v1648
          %v1665 = vmul.f32 %v1502, %v1649
          %v1666 = vmul.f32 %v1504, %v1650
          %v1667 = vmul.f32 %v1506, %v1651
          %v1668 = vmul.f32 %v1508, %v1652
          %1669 = vadd.xlane.f32.xlu0 %v1606
          %v1670 = vpop.xlane.xlu0 %1669
          %1671 = vadd.xlane.f32.xlu0 %v1608
          %v1672 = vpop.xlane.xlu0 %1671
          %1673 = vadd.xlane.f32.xlu0 %v1610
          %v1674 = vpop.xlane.xlu0 %1673
          %1675 = vadd.xlane.f32.xlu0 %v1612
          %v1676 = vpop.xlane.xlu0 %1675
          %1677 = vadd.xlane.f32.xlu0 %v1614
          %v1678 = vpop.xlane.xlu0 %1677
          %1679 = vadd.xlane.f32.xlu0 %v1616
          %v1680 = vpop.xlane.xlu0 %1679
          %1681 = vadd.xlane.f32.xlu0 %v1618
          %v1682 = vpop.xlane.xlu0 %1681
          %1683 = vadd.xlane.f32.xlu0 %v1620
          %v1684 = vpop.xlane.xlu0 %1683
          %1685 = vadd.xlane.f32.xlu0 %v1622
          %v1686 = vpop.xlane.xlu0 %1685
          %1687 = vadd.xlane.f32.xlu0 %v1624
          %v1688 = vpop.xlane.xlu0 %1687
          %1689 = vadd.xlane.f32.xlu0 %v1626
          %v1690 = vpop.xlane.xlu0 %1689
          %1691 = vadd.xlane.f32.xlu0 %v1628
          %v1692 = vpop.xlane.xlu0 %1691
          %1693 = vadd.xlane.f32.xlu0 %v1630
          %v1694 = vpop.xlane.xlu0 %1693
          %1695 = vadd.xlane.f32.xlu0 %v1632
          %v1696 = vpop.xlane.xlu0 %1695
          %1697 = vadd.xlane.f32.xlu0 %v1634
          %v1698 = vpop.xlane.xlu0 %1697
          %1699 = vadd.xlane.f32.xlu0 %v1636
          %v1700 = vpop.xlane.xlu0 %1699
          %v1701 = vadd.f32 %v1653, %v1670
          %v1702 = vadd.f32 %v1654, %v1672
          %v1703 = vadd.f32 %v1655, %v1674
          %v1704 = vadd.f32 %v1656, %v1676
          %v1705 = vadd.f32 %v1657, %v1678
          %v1706 = vadd.f32 %v1658, %v1680
          %v1707 = vadd.f32 %v1659, %v1682
          %v1708 = vadd.f32 %v1660, %v1684
          %v1709 = vadd.f32 %v1661, %v1686
          %v1710 = vadd.f32 %v1662, %v1688
          %v1711 = vadd.f32 %v1663, %v1690
          %v1712 = vadd.f32 %v1664, %v1692
          %v1713 = vadd.f32 %v1665, %v1694
          %v1714 = vadd.f32 %v1666, %v1696
          %v1715 = vadd.f32 %v1667, %v1698
          %v1716 = vadd.f32 %v1668, %v1700
          %vm1717 = vcmask 7168
          %1718 = vst.msk [vmem:[#allocation4] sm:$0xff] %vm1717, %v1701
          %1719 = vst.msk [vmem:[#allocation4 + $0x8] sm:$0xff] %vm1717, %v1702
          %1720 = vst.msk [vmem:[#allocation4 + $0x10] sm:$0xff] %vm1717, %v1703
          %1721 = vst.msk [vmem:[#allocation4 + $0x18] sm:$0xff] %vm1717, %v1704
          %1722 = vst.msk [vmem:[#allocation4 + $0x20] sm:$0xff] %vm1717, %v1705
          %1723 = vst.msk [vmem:[#allocation4 + $0x28] sm:$0xff] %vm1717, %v1706
          %1724 = vst.msk [vmem:[#allocation4 + $0x30] sm:$0xff] %vm1717, %v1707
          %1725 = vst.msk [vmem:[#allocation4 + $0x38] sm:$0xff] %vm1717, %v1708
          %1726 = vst.msk [vmem:[#allocation4 + $0x40] sm:$0xff] %vm1717, %v1709
          %1727 = vst.msk [vmem:[#allocation4 + $0x48] sm:$0xff] %vm1717, %v1710
          %1728 = vst.msk [vmem:[#allocation4 + $0x50] sm:$0xff] %vm1717, %v1711
          %1729 = vst.msk [vmem:[#allocation4 + $0x58] sm:$0xff] %vm1717, %v1712
          %1730 = vst.msk [vmem:[#allocation4 + $0x60] sm:$0xff] %vm1717, %v1713
          %1731 = vst.msk [vmem:[#allocation4 + $0x68] sm:$0xff] %vm1717, %v1714
          %1732 = vst.msk [vmem:[#allocation4 + $0x70] sm:$0xff] %vm1717, %v1715
          %1733 = vst.msk [vmem:[#allocation4 + $0x78] sm:$0xff] %vm1717, %v1716
          %v1734 = vld [vmem:[#allocation5] sm:$0xff]
          %v1735 = vld [vmem:[#allocation5 + $0x8] sm:$0xff]
          %v1736 = vld [vmem:[#allocation5 + $0x10] sm:$0xff]
          %v1737 = vld [vmem:[#allocation5 + $0x18] sm:$0xff]
          %v1738 = vld [vmem:[#allocation5 + $0x20] sm:$0xff]
          %v1739 = vld [vmem:[#allocation5 + $0x28] sm:$0xff]
          %v1740 = vld [vmem:[#allocation5 + $0x30] sm:$0xff]
          %v1741 = vld [vmem:[#allocation5 + $0x38] sm:$0xff]
          %v1742 = vld [vmem:[#allocation5 + $0x40] sm:$0xff]
          %v1743 = vld [vmem:[#allocation5 + $0x48] sm:$0xff]
          %v1744 = vld [vmem:[#allocation5 + $0x50] sm:$0xff]
          %v1745 = vld [vmem:[#allocation5 + $0x58] sm:$0xff]
          %v1746 = vld [vmem:[#allocation5 + $0x60] sm:$0xff]
          %v1747 = vld [vmem:[#allocation5 + $0x68] sm:$0xff]
          %v1748 = vld [vmem:[#allocation5 + $0x70] sm:$0xff]
          %v1749 = vld [vmem:[#allocation5 + $0x78] sm:$0xff]
          %1751 = vset.pattern.permute.xlu0 0
          %1752 = vperm.xlu0 %1751, %v1478
          %v1753 = vpop.permute.xlu0 %1752
          %1756 = vset.pattern.permute.xlu0 0
          %1757 = vperm.xlu0 %1756, %v1480
          %v1758 = vpop.permute.xlu0 %1757
          %1761 = vset.pattern.permute.xlu0 0
          %1762 = vperm.xlu0 %1761, %v1482
          %v1763 = vpop.permute.xlu0 %1762
          %1766 = vset.pattern.permute.xlu0 0
          %1767 = vperm.xlu0 %1766, %v1484
          %v1768 = vpop.permute.xlu0 %1767
          %1771 = vset.pattern.permute.xlu0 0
          %1772 = vperm.xlu0 %1771, %v1486
          %v1773 = vpop.permute.xlu0 %1772
          %1776 = vset.pattern.permute.xlu0 0
          %1777 = vperm.xlu0 %1776, %v1488
          %v1778 = vpop.permute.xlu0 %1777
          %1781 = vset.pattern.permute.xlu0 0
          %1782 = vperm.xlu0 %1781, %v1490
          %v1783 = vpop.permute.xlu0 %1782
          %1786 = vset.pattern.permute.xlu0 0
          %1787 = vperm.xlu0 %1786, %v1492
          %v1788 = vpop.permute.xlu0 %1787
          %1791 = vset.pattern.permute.xlu0 0
          %1792 = vperm.xlu0 %1791, %v1494
          %v1793 = vpop.permute.xlu0 %1792
          %1796 = vset.pattern.permute.xlu0 0
          %1797 = vperm.xlu0 %1796, %v1496
          %v1798 = vpop.permute.xlu0 %1797
          %1801 = vset.pattern.permute.xlu0 0
          %1802 = vperm.xlu0 %1801, %v1498
          %v1803 = vpop.permute.xlu0 %1802
          %1806 = vset.pattern.permute.xlu0 0
          %1807 = vperm.xlu0 %1806, %v1500
          %v1808 = vpop.permute.xlu0 %1807
          %1811 = vset.pattern.permute.xlu0 0
          %1812 = vperm.xlu0 %1811, %v1502
          %v1813 = vpop.permute.xlu0 %1812
          %1816 = vset.pattern.permute.xlu0 0
          %1817 = vperm.xlu0 %1816, %v1504
          %v1818 = vpop.permute.xlu0 %1817
          %1821 = vset.pattern.permute.xlu0 0
          %1822 = vperm.xlu0 %1821, %v1506
          %v1823 = vpop.permute.xlu0 %1822
          %1826 = vset.pattern.permute.xlu0 0
          %1827 = vperm.xlu0 %1826, %v1508
          %v1828 = vpop.permute.xlu0 %1827
          %v1830 = vmul.f32 %v1753, %v1734
          %v1831 = vmul.f32 %v1758, %v1735
          %v1832 = vmul.f32 %v1763, %v1736
          %v1833 = vmul.f32 %v1768, %v1737
          %v1834 = vmul.f32 %v1773, %v1738
          %v1835 = vmul.f32 %v1778, %v1739
          %v1836 = vmul.f32 %v1783, %v1740
          %v1837 = vmul.f32 %v1788, %v1741
          %v1838 = vmul.f32 %v1793, %v1742
          %v1839 = vmul.f32 %v1798, %v1743
          %v1840 = vmul.f32 %v1803, %v1744
          %v1841 = vmul.f32 %v1808, %v1745
          %v1842 = vmul.f32 %v1813, %v1746
          %v1843 = vmul.f32 %v1818, %v1747
          %v1844 = vmul.f32 %v1823, %v1748
          %v1845 = vmul.f32 %v1828, %v1749
          %v1846 = vpack.c.bf16 %v1608, %v1606
          %v1847 = vpack.c.bf16 %v1612, %v1610
          %v1848 = vpack.c.bf16 %v1616, %v1614
          %v1849 = vpack.c.bf16 %v1620, %v1618
          %v1850 = vpack.c.bf16 %v1624, %v1622
          %v1851 = vpack.c.bf16 %v1628, %v1626
          %v1852 = vpack.c.bf16 %v1632, %v1630
          %v1853 = vpack.c.bf16 %v1636, %v1634
          %1854 = vmatprep.subr.bf16.mxu0 0
          %1855 = vmatpush1.bf16.msra.mxu0 %v1389
          %1856 = vmatprep.subr.bf16.mxu0 0
          %1857 = vmatpush1.bf16.msra.mxu0 %v1390
          %1858 = vmatprep.subr.bf16.mxu0 0
          %1859 = vmatpush1.bf16.msra.mxu0 %v1391
          %1860 = vmatprep.subr.bf16.mxu0 0
          %1861 = vmatpush1.bf16.msra.mxu0 %v1392
          %1862 = vmatprep.subr.bf16.mxu0 0
          %1863 = vmatpush1.bf16.msra.mxu0 %v1393
          %1864 = vmatprep.subr.bf16.mxu0 0
          %1865 = vmatpush1.bf16.msra.mxu0 %v1394
          %1866 = vmatprep.subr.bf16.mxu0 0
          %1867 = vmatpush1.bf16.msra.mxu0 %v1395
          %1868 = vmatprep.subr.bf16.mxu0 0
          %1869 = vmatpush1.bf16.msra.mxu0 %v1396
          %1870 = vmatprep.subr.bf16.mxu0 0
          %1871 = vmatpush1.bf16.msra.mxu0 0
          %1872 = vmatprep.subr.bf16.mxu0 0
          %1873 = vmatpush1.bf16.msra.mxu0 0
          %1874 = vmatprep.subr.bf16.mxu0 0
          %1875 = vmatpush1.bf16.msra.mxu0 0
          %1876 = vmatprep.subr.bf16.mxu0 0
          %1877 = vmatpush1.bf16.msra.mxu0 0
          %1878 = vmatprep.subr.bf16.mxu0 0
          %1879 = vmatpush1.bf16.msra.mxu0 0
          %1880 = vmatprep.subr.bf16.mxu0 0
          %1881 = vmatpush1.bf16.msra.mxu0 0
          %1882 = vmatprep.subr.bf16.mxu0 0
          %1883 = vmatpush1.bf16.msra.mxu0 0
          %1884 = vmatprep.subr.bf16.mxu0 0
          %1885 = vmatpush1.bf16.msra.mxu0 0
          %1886 = vmatprep.mubr.bf16.mxu0 0
          %1887 = vmatmul.mubr.bf16.gmra.mrb[0].mxu0 %v1846
          %v1888 = vpop.f32.mrb[0].mxu0
          %v1889 = vadd.f32 0.0, %v1888
          %v1890 = vpop.f32.mrb[0].mxu0
          %v1891 = vpop.f32.mrb[0].mxu0
          %v1892 = vadd.f32 0.0, %v1891
          %v1893 = vpop.f32.mrb[0].mxu0
          %1894 = vmatprep.mubr.bf16.mxu0 0
          %1895 = vmatmul.mubr.bf16.gmra.mrb[0].mxu0 %v1847
          %v1896 = vpop.f32.mrb[0].mxu0
          %v1897 = vadd.f32 0.0, %v1896
          %v1898 = vpop.f32.mrb[0].mxu0
          %v1899 = vpop.f32.mrb[0].mxu0
          %v1900 = vadd.f32 0.0, %v1899
          %v1901 = vpop.f32.mrb[0].mxu0
          %1902 = vmatprep.mubr.bf16.mxu0 0
          %1903 = vmatmul.mubr.bf16.gmra.mrb[0].mxu0 %v1848
          %v1904 = vpop.f32.mrb[0].mxu0
          %v1905 = vadd.f32 0.0, %v1904
          %v1906 = vpop.f32.mrb[0].mxu0
          %v1907 = vpop.f32.mrb[0].mxu0
          %v1908 = vadd.f32 0.0, %v1907
          %v1909 = vpop.f32.mrb[0].mxu0
          %1910 = vmatprep.mubr.bf16.mxu0 0
          %1911 = vmatmul.mubr.bf16.gmra.mrb[0].mxu0 %v1849
          %v1912 = vpop.f32.mrb[0].mxu0
          %v1913 = vadd.f32 0.0, %v1912
          %v1914 = vpop.f32.mrb[0].mxu0
          %v1915 = vpop.f32.mrb[0].mxu0
          %v1916 = vadd.f32 0.0, %v1915
          %v1917 = vpop.f32.mrb[0].mxu0
          %1918 = vmatprep.mubr.bf16.mxu0 0
          %1919 = vmatmul.mubr.bf16.gmra.mrb[0].mxu0 %v1850
          %v1920 = vpop.f32.mrb[0].mxu0
          %v1921 = vadd.f32 0.0, %v1920
          %v1922 = vpop.f32.mrb[0].mxu0
          %v1923 = vpop.f32.mrb[0].mxu0
          %v1924 = vadd.f32 0.0, %v1923
          %v1925 = vpop.f32.mrb[0].mxu0
          %1926 = vmatprep.mubr.bf16.mxu0 0
          %1927 = vmatmul.mubr.bf16.gmra.mrb[0].mxu0 %v1851
          %v1928 = vpop.f32.mrb[0].mxu0
          %v1929 = vadd.f32 0.0, %v1928
          %v1930 = vpop.f32.mrb[0].mxu0
          %v1931 = vpop.f32.mrb[0].mxu0
          %v1932 = vadd.f32 0.0, %v1931
          %v1933 = vpop.f32.mrb[0].mxu0
          %1934 = vmatprep.mubr.bf16.mxu0 0
          %1935 = vmatmul.mubr.bf16.gmra.mrb[0].mxu0 %v1852
          %v1936 = vpop.f32.mrb[0].mxu0
          %v1937 = vadd.f32 0.0, %v1936
          %v1938 = vpop.f32.mrb[0].mxu0
          %v1939 = vpop.f32.mrb[0].mxu0
          %v1940 = vadd.f32 0.0, %v1939
          %v1941 = vpop.f32.mrb[0].mxu0
          %1942 = vmatprep.mubr.bf16.mxu0 0
          %1943 = vmatmul.mubr.bf16.gmra.mrb[0].mxu0 %v1853
          %v1944 = vpop.f32.mrb[0].mxu0
          %v1945 = vadd.f32 0.0, %v1944
          %v1946 = vpop.f32.mrb[0].mxu0
          %v1947 = vpop.f32.mrb[0].mxu0
          %v1948 = vadd.f32 0.0, %v1947
          %v1949 = vpop.f32.mrb[0].mxu0
          %1950 = vdwg.mxu0
          %v1951 = vadd.f32 %v1830, %v1889
          %v1952 = vadd.f32 %v1831, %v1892
          %v1953 = vadd.f32 %v1832, %v1897
          %v1954 = vadd.f32 %v1833, %v1900
          %v1955 = vadd.f32 %v1834, %v1905
          %v1956 = vadd.f32 %v1835, %v1908
          %v1957 = vadd.f32 %v1836, %v1913
          %v1958 = vadd.f32 %v1837, %v1916
          %v1959 = vadd.f32 %v1838, %v1921
          %v1960 = vadd.f32 %v1839, %v1924
          %v1961 = vadd.f32 %v1840, %v1929
          %v1962 = vadd.f32 %v1841, %v1932
          %v1963 = vadd.f32 %v1842, %v1937
          %v1964 = vadd.f32 %v1843, %v1940
          %v1965 = vadd.f32 %v1844, %v1945
          %v1966 = vadd.f32 %v1845, %v1948
          %1967 = vst [vmem:[#allocation5] sm:$0xff] %v1951
          %1968 = vst [vmem:[#allocation5 + $0x8] sm:$0xff] %v1952
          %1969 = vst [vmem:[#allocation5 + $0x10] sm:$0xff] %v1953
          %1970 = vst [vmem:[#allocation5 + $0x18] sm:$0xff] %v1954
          %1971 = vst [vmem:[#allocation5 + $0x20] sm:$0xff] %v1955
          %1972 = vst [vmem:[#allocation5 + $0x28] sm:$0xff] %v1956
          %1973 = vst [vmem:[#allocation5 + $0x30] sm:$0xff] %v1957
          %1974 = vst [vmem:[#allocation5 + $0x38] sm:$0xff] %v1958
          %1975 = vst [vmem:[#allocation5 + $0x40] sm:$0xff] %v1959
          %1976 = vst [vmem:[#allocation5 + $0x48] sm:$0xff] %v1960
          %1977 = vst [vmem:[#allocation5 + $0x50] sm:$0xff] %v1961
          %1978 = vst [vmem:[#allocation5 + $0x58] sm:$0xff] %v1962
          %1979 = vst [vmem:[#allocation5 + $0x60] sm:$0xff] %v1963
          %1980 = vst [vmem:[#allocation5 + $0x68] sm:$0xff] %v1964
          %1981 = vst [vmem:[#allocation5 + $0x70] sm:$0xff] %v1965
          %1982 = vst [vmem:[#allocation5 + $0x78] sm:$0xff] %v1966
          %1983 = vst.msk [vmem:[#allocation3] sm:$0xff] %vm1717, %v1445
          %1984 = vst.msk [vmem:[#allocation3 + $0x8] sm:$0xff] %vm1717, %v1446
          %1985 = vst.msk [vmem:[#allocation3 + $0x10] sm:$0xff] %vm1717, %v1447
          %1986 = vst.msk [vmem:[#allocation3 + $0x18] sm:$0xff] %vm1717, %v1448
          %1987 = vst.msk [vmem:[#allocation3 + $0x20] sm:$0xff] %vm1717, %v1449
          %1988 = vst.msk [vmem:[#allocation3 + $0x28] sm:$0xff] %vm1717, %v1450
          %1989 = vst.msk [vmem:[#allocation3 + $0x30] sm:$0xff] %vm1717, %v1451
          %1990 = vst.msk [vmem:[#allocation3 + $0x38] sm:$0xff] %vm1717, %v1452
          %1991 = vst.msk [vmem:[#allocation3 + $0x40] sm:$0xff] %vm1717, %v1453
          %1992 = vst.msk [vmem:[#allocation3 + $0x48] sm:$0xff] %vm1717, %v1454
          %1993 = vst.msk [vmem:[#allocation3 + $0x50] sm:$0xff] %vm1717, %v1455
          %1994 = vst.msk [vmem:[#allocation3 + $0x58] sm:$0xff] %vm1717, %v1456
          %1995 = vst.msk [vmem:[#allocation3 + $0x60] sm:$0xff] %vm1717, %v1457
          %1996 = vst.msk [vmem:[#allocation3 + $0x68] sm:$0xff] %vm1717, %v1458
          %1997 = vst.msk [vmem:[#allocation3 + $0x70] sm:$0xff] %vm1717, %v1459
          %1998 = vst.msk [vmem:[#allocation3 + $0x78] sm:$0xff] %vm1717, %v1460
        $region56: #{tpu_custom_call.1} parent=31 // pred_fallthru
          _
        %p1999 = scmp.eq.s32.totalorder %s30, 1
        // Predicated region
        $region57: #{tpu_custom_call.1} parent=31 // pred_check
          %p2000 = pneg %p1999
        $region58: #{tpu_custom_call.1} parent=31 // pred_check_branch
          %2002 = sbr.rel (%p2000) target = $region60
        $region59: #{tpu_custom_call.1} parent=31 // pred_region
          %v2003 = vld [vmem:[#allocation4] sm:$0xff]
          %v2004 = vld [vmem:[#allocation4 + $0x8] sm:$0xff]
          %v2005 = vld [vmem:[#allocation4 + $0x10] sm:$0xff]
          %v2006 = vld [vmem:[#allocation4 + $0x18] sm:$0xff]
          %v2007 = vld [vmem:[#allocation4 + $0x20] sm:$0xff]
          %v2008 = vld [vmem:[#allocation4 + $0x28] sm:$0xff]
          %v2009 = vld [vmem:[#allocation4 + $0x30] sm:$0xff]
          %v2010 = vld [vmem:[#allocation4 + $0x38] sm:$0xff]
          %v2011 = vld [vmem:[#allocation4 + $0x40] sm:$0xff]
          %v2012 = vld [vmem:[#allocation4 + $0x48] sm:$0xff]
          %v2013 = vld [vmem:[#allocation4 + $0x50] sm:$0xff]
          %v2014 = vld [vmem:[#allocation4 + $0x58] sm:$0xff]
          %v2015 = vld [vmem:[#allocation4 + $0x60] sm:$0xff]
          %v2016 = vld [vmem:[#allocation4 + $0x68] sm:$0xff]
          %v2017 = vld [vmem:[#allocation4 + $0x70] sm:$0xff]
          %v2018 = vld [vmem:[#allocation4 + $0x78] sm:$0xff]
          %v2019 = vrcp.pop %v2003
          %v2020 = vrcp.pop %v2004
          %v2021 = vrcp.pop %v2005
          %v2022 = vrcp.pop %v2006
          %v2023 = vrcp.pop %v2007
          %v2024 = vrcp.pop %v2008
          %v2025 = vrcp.pop %v2009
          %v2026 = vrcp.pop %v2010
          %v2027 = vrcp.pop %v2011
          %v2028 = vrcp.pop %v2012
          %v2029 = vrcp.pop %v2013
          %v2030 = vrcp.pop %v2014
          %v2031 = vrcp.pop %v2015
          %v2032 = vrcp.pop %v2016
          %v2033 = vrcp.pop %v2017
          %v2034 = vrcp.pop %v2018
          %v2035 = vld [vmem:[#allocation5] sm:$0xff]
          %v2036 = vld [vmem:[#allocation5 + $0x8] sm:$0xff]
          %v2037 = vld [vmem:[#allocation5 + $0x10] sm:$0xff]
          %v2038 = vld [vmem:[#allocation5 + $0x18] sm:$0xff]
          %v2039 = vld [vmem:[#allocation5 + $0x20] sm:$0xff]
          %v2040 = vld [vmem:[#allocation5 + $0x28] sm:$0xff]
          %v2041 = vld [vmem:[#allocation5 + $0x30] sm:$0xff]
          %v2042 = vld [vmem:[#allocation5 + $0x38] sm:$0xff]
          %v2043 = vld [vmem:[#allocation5 + $0x40] sm:$0xff]
          %v2044 = vld [vmem:[#allocation5 + $0x48] sm:$0xff]
          %v2045 = vld [vmem:[#allocation5 + $0x50] sm:$0xff]
          %v2046 = vld [vmem:[#allocation5 + $0x58] sm:$0xff]
          %v2047 = vld [vmem:[#allocation5 + $0x60] sm:$0xff]
          %v2048 = vld [vmem:[#allocation5 + $0x68] sm:$0xff]
          %v2049 = vld [vmem:[#allocation5 + $0x70] sm:$0xff]
          %v2050 = vld [vmem:[#allocation5 + $0x78] sm:$0xff]
          %2052 = vset.pattern.permute.xlu0 0
          %2053 = vperm.xlu0 %2052, %v2019
          %v2054 = vpop.permute.xlu0 %2053
          %2057 = vset.pattern.permute.xlu0 0
          %2058 = vperm.xlu0 %2057, %v2020
          %v2059 = vpop.permute.xlu0 %2058
          %2062 = vset.pattern.permute.xlu0 0
          %2063 = vperm.xlu0 %2062, %v2021
          %v2064 = vpop.permute.xlu0 %2063
          %2067 = vset.pattern.permute.xlu0 0
          %2068 = vperm.xlu0 %2067, %v2022
          %v2069 = vpop.permute.xlu0 %2068
          %2072 = vset.pattern.permute.xlu0 0
          %2073 = vperm.xlu0 %2072, %v2023
          %v2074 = vpop.permute.xlu0 %2073
          %2077 = vset.pattern.permute.xlu0 0
          %2078 = vperm.xlu0 %2077, %v2024
          %v2079 = vpop.permute.xlu0 %2078
          %2082 = vset.pattern.permute.xlu0 0
          %2083 = vperm.xlu0 %2082, %v2025
          %v2084 = vpop.permute.xlu0 %2083
          %2087 = vset.pattern.permute.xlu0 0
          %2088 = vperm.xlu0 %2087, %v2026
          %v2089 = vpop.permute.xlu0 %2088
          %2092 = vset.pattern.permute.xlu0 0
          %2093 = vperm.xlu0 %2092, %v2027
          %v2094 = vpop.permute.xlu0 %2093
          %2097 = vset.pattern.permute.xlu0 0
          %2098 = vperm.xlu0 %2097, %v2028
          %v2099 = vpop.permute.xlu0 %2098
          %2102 = vset.pattern.permute.xlu0 0
          %2103 = vperm.xlu0 %2102, %v2029
          %v2104 = vpop.permute.xlu0 %2103
          %2107 = vset.pattern.permute.xlu0 0
          %2108 = vperm.xlu0 %2107, %v2030
          %v2109 = vpop.permute.xlu0 %2108
          %2112 = vset.pattern.permute.xlu0 0
          %2113 = vperm.xlu0 %2112, %v2031
          %v2114 = vpop.permute.xlu0 %2113
          %2117 = vset.pattern.permute.xlu0 0
          %2118 = vperm.xlu0 %2117, %v2032
          %v2119 = vpop.permute.xlu0 %2118
          %2122 = vset.pattern.permute.xlu0 0
          %2123 = vperm.xlu0 %2122, %v2033
          %v2124 = vpop.permute.xlu0 %2123
          %2127 = vset.pattern.permute.xlu0 0
          %2128 = vperm.xlu0 %2127, %v2034
          %v2129 = vpop.permute.xlu0 %2128
          %v2131 = vmul.f32 %v2035, %v2054
          %v2132 = vmul.f32 %v2036, %v2059
          %v2133 = vmul.f32 %v2037, %v2064
          %v2134 = vmul.f32 %v2038, %v2069
          %v2135 = vmul.f32 %v2039, %v2074
          %v2136 = vmul.f32 %v2040, %v2079
          %v2137 = vmul.f32 %v2041, %v2084
          %v2138 = vmul.f32 %v2042, %v2089
          %v2139 = vmul.f32 %v2043, %v2094
          %v2140 = vmul.f32 %v2044, %v2099
          %v2141 = vmul.f32 %v2045, %v2104
          %v2142 = vmul.f32 %v2046, %v2109
          %v2143 = vmul.f32 %v2047, %v2114
          %v2144 = vmul.f32 %v2048, %v2119
          %v2145 = vmul.f32 %v2049, %v2124
          %v2146 = vmul.f32 %v2050, %v2129
          %2147 = vst [vmem:[%s298] sm:$0xff] %v2131
          %2148 = vst [vmem:[%s298 + $0x8] sm:$0xff] %v2132
          %2149 = vst [vmem:[%s298 + $0x10] sm:$0xff] %v2133
          %2150 = vst [vmem:[%s298 + $0x18] sm:$0xff] %v2134
          %2151 = vst [vmem:[%s298 + $0x20] sm:$0xff] %v2135
          %2152 = vst [vmem:[%s298 + $0x28] sm:$0xff] %v2136
          %2153 = vst [vmem:[%s298 + $0x30] sm:$0xff] %v2137
          %2154 = vst [vmem:[%s298 + $0x38] sm:$0xff] %v2138
          %2155 = vst [vmem:[%s298 + $0x40] sm:$0xff] %v2139
          %2156 = vst [vmem:[%s298 + $0x48] sm:$0xff] %v2140
          %2157 = vst [vmem:[%s298 + $0x50] sm:$0xff] %v2141
          %2158 = vst [vmem:[%s298 + $0x58] sm:$0xff] %v2142
          %2159 = vst [vmem:[%s298 + $0x60] sm:$0xff] %v2143
          %2160 = vst [vmem:[%s298 + $0x68] sm:$0xff] %v2144
          %2161 = vst [vmem:[%s298 + $0x70] sm:$0xff] %v2145
          %2162 = vst [vmem:[%s298 + $0x78] sm:$0xff] %v2146
        $region60: #{tpu_custom_call.1} parent=31 // pred_fallthru
          _
        %s2163 = sand.u32 %s136, 1
        %s2164 = scalar_lea.sflag [#allocation8], %s2163
        %s2165 = sand.u32 %s136, 1
        %s2166 = smul.addr %s2165, 128
        %s2167 = scalar_lea.vmem [#allocation12], %s2166
        // Predicated region
        $region61: #{tpu_custom_call.1} parent=31 // pred_check
          %p2168 = pneg %p146
        $region62: #{tpu_custom_call.1} parent=31 // pred_check_branch
          %2170 = sbr.rel (%p2168) target = $region64
        $region63: #{tpu_custom_call.1} parent=31 // pred_region
          %s2171 = smul.u32 16, %s29
          %s2173 = ssub.s32 2048, 2048
          %2174 = vsyncadd %s2164, %s2173
          %s2175 = smul.addr %s28, 32
          %s2176 = sadd.s32 %s2171, %s2175
          %s2177 = smul.addr %s2176, 128
          %s2178 = scalar_lea.hbm %s3, %s2177
          %s2179 = sshll.u32 %s2167, 4
          %s2180 = int_to_ptr.vmem [resolvable:$true] %s2179
          %2185 = dma.vmem_to_hbm [thread:$0]  %s2180, 2048, %s2178, %s2164, 128, 128, 8
        $region64: #{tpu_custom_call.1} parent=31 // pred_fallthru
          _
      $region32: #{tpu_custom_call.1} parent=5 // pred_fallthru
        _
      %p2186 = scmp.le.s32.totalorder 2, %s18
      // Predicated region
      $region65: #{tpu_custom_call.1} parent=5 // pred_check
        %p2187 = pneg %p2186
      $region66: #{tpu_custom_call.1} parent=5 // pred_check_branch
        %2189 = sbr.rel (%p2187) target = $region68
      $region67: #{tpu_custom_call.1} parent=5 // pred_region
        %s2190 = ssub.s32 %s18, 2
        // Predicated region
        $region69: #{tpu_custom_call.1} parent=67 // pred_check
          %p2191 = pneg %p152
        $region70: #{tpu_custom_call.1} parent=67 // pred_check_branch
          %2193 = sbr.rel (%p2191) target = $region72
        $region71: #{tpu_custom_call.1} parent=67 // pred_region
          %s2194 = sand.u32 %s137, 1
          %s2195 = scalar_lea.sflag [#allocation8], %s2194
          %s2196 = sand.u32 %s137, 1
          %s2197 = smul.addr %s2196, 128
          %s2198 = scalar_lea.vmem [#allocation12], %s2197
          %2199 = dma.done %s2195, 2048
        $region72: #{tpu_custom_call.1} parent=67 // pred_fallthru
          _
      $region68: #{tpu_custom_call.1} parent=5 // pred_fallthru
        _
    $region6: #{tpu_custom_call.1} parent=1 // loop_footer
      %s22 = sadd.s32 1, %s18
    $region7: #{tpu_custom_call.1} parent=1 // loop_footer_branch
      %17 = sbr.rel target = $region3
    $region8: #{tpu_custom_call.1} parent=1 // loop_exit
      _
    %2200 = vsyncpa [#allocation7], 1
    %s2201 = scalar_lea.sflag [#allocation7], 1
    %2202 = vsyncpa %s2201, 1
    %2203 = vsyncpa [#allocation10], 1
    %s2204 = scalar_lea.sflag [#allocation10], 1
    %2205 = vsyncpa %s2204, 1
    %2206 = vsyncpa [#allocation8], 1
    %s2207 = scalar_lea.sflag [#allocation8], 1
    %2208 = vsyncpa %s2207, 1

</llo_original>
